<compile_context>
chip_gen: v7x
topology: tpu7x:2x2x1
jax: 0.10.0
libtpu: 0.0.40
codegen_flags: <defaults>
</compile_context>

<pallas_src>
import functools

import jax
import jax.numpy as jnp
import numpy as np
from jax.experimental import pallas as pl
from jax.experimental.pallas import tpu as pltpu

_VMEM_LIMIT = 48 * 1024 * 1024  # explicit scoped-VMEM budget (headroom on v7x's 64 MiB)


def _round_up(v, m):
    return ((v + m - 1) // m) * m


# --------------------------------------------------------------------------- #
# Pallas kernel 1: tiled fused matmul  out = [relu]( X @ W + bias )            #
#   X bf16 (M,K), W bf16 (K,N) with BN scale pre-folded, bias f32 (1,N)        #
#   grid = (M tiles, N tiles, K tiles); K is the reduction axis (last,         #
#   "arbitrary") with a VMEM f32 accumulator.                                  #
# --------------------------------------------------------------------------- #
def _matmul_kernel(x_ref, w_ref, b_ref, o_ref, acc_ref, *, relu):
    k = pl.program_id(2)

    @pl.when(k == 0)
    def _():
        acc_ref[...] = jnp.zeros_like(acc_ref)

    acc_ref[...] += jnp.dot(x_ref[...], w_ref[...], preferred_element_type=jnp.float32)

    @pl.when(k == pl.num_programs(2) - 1)
    def _():
        acc = acc_ref[...] + b_ref[...]
        if relu:
            acc = jnp.maximum(acc, 0.0)
        o_ref[...] = acc.astype(o_ref.dtype)


def fused_matmul(x, w, bias, relu, out_dtype=jnp.bfloat16):
    """x: (M, K), w: (K, N) (BN scale already folded), bias: (N,) -> (M, N)."""
    M, K = x.shape
    K2, N = w.shape
    assert K == K2
    bias2 = bias.reshape(1, N).astype(jnp.float32)

    if M < 128:
        # Review: tiny matmuls (PPM stages, deepest FPN lateral) sit far below
        # the ~600-cycle per-step Pallas floor and waste a padded MXU launch.
        y = jnp.dot(x.astype(jnp.bfloat16), w.astype(jnp.bfloat16),
                    preferred_element_type=jnp.float32) + bias2
        if relu:
            y = jnp.maximum(y, 0.0)
        return y.astype(out_dtype)

    # ---- tile selection ---------------------------------------------------- #
    # K tiling only kicks in for large K (production channel counts); at toy
    # sizes the grid collapses to a single K step but the accumulator structure
    # is already in place.
    tk = K if K <= 1024 else 512
    Kp = _round_up(K, tk)
    # Lane-dense N (multiple of 128); 256-wide tiles for big N (v6e/v7x MXU).
    Np = _round_up(N, 128)
    if Np <= 512:
        tn = Np
    else:
        tn = 256
        Np = _round_up(Np, 256)
    # Large M tiles (per review), but keep >=2 parallel steps when possible so
    # v7x's two TensorCores both get work.
    if M >= 1024:
        tm = 512
    elif M >= 256:
        tm = 256
    else:
        tm = 128
    Mp = _round_up(M, tm)

    xp = jnp.pad(x.astype(jnp.bfloat16), ((0, Mp - M), (0, Kp - K)))
    wp = jnp.pad(w.astype(jnp.bfloat16), ((0, Kp - K), (0, Np - N)))
    bp = jnp.pad(bias2, ((0, 0), (0, Np - N)))

    grid = (Mp // tm, Np // tn, Kp // tk)
    out = pl.pallas_call(
        functools.partial(_matmul_kernel, relu=relu),
        out_shape=jax.ShapeDtypeStruct((Mp, Np), out_dtype),
        grid_spec=pltpu.PrefetchScalarGridSpec(
            num_scalar_prefetch=0,
            grid=grid,
            in_specs=[
                pl.BlockSpec((tm, tk), lambda i, j, k: (i, k)),
                pl.BlockSpec((tk, tn), lambda i, j, k: (k, j)),
                pl.BlockSpec((1, tn), lambda i, j, k: (0, j)),
            ],
            out_specs=pl.BlockSpec((tm, tn), lambda i, j, k: (i, j)),
            scratch_shapes=[pltpu.VMEM((tm, tn), jnp.float32)],
        ),
        compiler_params=pltpu.CompilerParams(
            dimension_semantics=("parallel", "parallel", "arbitrary"),
            vmem_limit_bytes=_VMEM_LIMIT,
        ),
    )(xp, wp, bp)
    return out[:M, :N]


# --------------------------------------------------------------------------- #
# Pallas kernel 2: im2col-free 3x3 conv (stride 1, pad 1) + BN(bias) + ReLU    #
#   The padded image is row-flattened to (B, (H+2)*(W+2)+2, C).  For each of   #
#   the 9 taps, the needed LHS is a *contiguous* static row-slice of that      #
#   flat array, so the conv is 9 accumulating 2-D matmuls entirely in VMEM.    #
#   The two horizontal-padding output columns per row are garbage and are      #
#   sliced off in the wrapper.                                                 #
# --------------------------------------------------------------------------- #
def _conv3x3_kernel(x_ref, w_ref, b_ref, o_ref, acc_ref, *, tap_offsets, relu):
    m_out = acc_ref.shape[0]
    acc_ref[...] = jnp.zeros_like(acc_ref)
    for t, off in enumerate(tap_offsets):  # 9 static taps, accumulate in f32
        acc_ref[...] += jnp.dot(
            x_ref[pl.ds(off, m_out), :], w_ref[t],
            preferred_element_type=jnp.float32)
    acc = acc_ref[...] + b_ref[...]
    if relu:
        acc = jnp.maximum(acc, 0.0)
    o_ref[...] = acc.astype(o_ref.dtype)


def conv3x3_module(x, params, relu=True):
    """x: (B, H, W, C) NHWC.  params: (w(3,3,Cin,Cout) BN-folded, bias(Cout,))."""
    w, bias = params
    B, H, W, C = x.shape
    N = w.shape[-1]
    Np = _round_up(N, 128)          # lane-dense stores (review)
    Wp2 = W + 2
    m_out = H * Wp2                 # output rows incl. the 2 horizontal-pad cols
    r_in = (H + 2) * Wp2 + 2        # flattened padded rows (+2 slack for tap 2,2)

    # TODO(synk): at production spatial sizes tile H with a halo DMA instead of
    # keeping the whole (per-batch) padded image resident in VMEM.
    xpad = jnp.pad(x.astype(jnp.bfloat16), ((0, 0), (1, 1), (1, 1), (0, 0)))
    xflat = xpad.reshape(B, (H + 2) * Wp2, C)
    xflat = jnp.pad(xflat, ((0, 0), (0, 2), (0, 0)))

    w9 = jnp.pad(w.reshape(9, C, N).astype(jnp.bfloat16), ((0, 0), (0, 0), (0, Np - N)))
    b2 = jnp.pad(bias.reshape(1, N).astype(jnp.float32), ((0, 0), (0, Np - N)))

    tap_offsets = tuple(kh * Wp2 + kw for kh in range(3) for kw in range(3))

    out = pl.pallas_call(
        functools.partial(_conv3x3_kernel, tap_offsets=tap_offsets, relu=relu),
        out_shape=jax.ShapeDtypeStruct((B, m_out, Np), jnp.bfloat16),
        grid_spec=pltpu.PrefetchScalarGridSpec(
            num_scalar_prefetch=0,
            grid=(B,),                               # >=2 parallel steps (B=2)
            in_specs=[
                pl.BlockSpec((None, r_in, C), lambda b: (b, 0, 0)),
                pl.BlockSpec((9, C, Np), lambda b: (0, 0, 0)),
                pl.BlockSpec((1, Np), lambda b: (0, 0)),
            ],
            out_specs=pl.BlockSpec((None, m_out, Np), lambda b: (b, 0, 0)),
            scratch_shapes=[pltpu.VMEM((m_out, Np), jnp.float32)],
        ),
        compiler_params=pltpu.CompilerParams(
            dimension_semantics=("parallel",),
            vmem_limit_bytes=_VMEM_LIMIT,
        ),
    )(xflat, w9, b2)

    # drop the 2 horizontal-padding output columns and the channel padding
    return out.reshape(B, H, Wp2, Np)[:, :, :W, :N]


def conv1x1_module(x, params, relu=True):
    """x: (B, H, W, Cin) NHWC.  params: (w(Cin,Cout) BN-folded, bias(Cout,))."""
    w, bias = params
    B, H, W, C = x.shape
    y = fused_matmul(x.reshape(B * H * W, C), w, bias, relu=relu)
    return y.reshape(B, H, W, -1)


# --------------------------------------------------------------------------- #
# Bilinear resize / adaptive average pooling (PyTorch-equivalent formulas)     #
# Kept as tiny interpolation-matrix einsums in XLA glue.                       #
# TODO(synk): fuse the bilinear upsample + lateral add into the fpn_out conv   #
# kernel (and the final multi-level resize+concat into the bottleneck conv) to #
# remove two full-tensor HBM round trips per FPN level.                        #
# --------------------------------------------------------------------------- #
def _bilinear_matrix(out_size, in_size, align_corners):
    if out_size == in_size:
        return np.eye(out_size, dtype=np.float32)
    i = np.arange(out_size, dtype=np.float64)
    if align_corners:
        src = np.zeros_like(i) if out_size == 1 else i * (in_size - 1) / (out_size - 1)
    else:
        src = (i + 0.5) * in_size / out_size - 0.5
        src = np.maximum(src, 0.0)
    i0 = np.minimum(np.floor(src).astype(np.int64), in_size - 1)
    i1 = np.minimum(i0 + 1, in_size - 1)
    w1 = src - i0
    w0 = 1.0 - w1
    m = np.zeros((out_size, in_size), dtype=np.float64)
    m[np.arange(out_size), i0] += w0
    m[np.arange(out_size), i1] += w1
    return m.astype(np.float32)


def _adaptive_pool_matrix(out_size, in_size):
    m = np.zeros((out_size, in_size), dtype=np.float32)
    for o in range(out_size):
        start = (o * in_size) // out_size
        end = -((-(o + 1) * in_size) // out_size)  # ceil((o+1)*in/out)
        m[o, start:end] = 1.0 / (end - start)
    return m


def _apply_hw_matrices(x, mh, mw):
    y = jnp.einsum("ph,bhwc->bpwc", jnp.asarray(mh), x.astype(jnp.float32))
    y = jnp.einsum("qw,bpwc->bpqc", jnp.asarray(mw), y)
    return y.astype(x.dtype)


def resize_bilinear(x, out_hw, align_corners):
    B, H, W, C = x.shape
    oh, ow = out_hw
    return _apply_hw_matrices(
        x, _bilinear_matrix(oh, H, align_corners), _bilinear_matrix(ow, W, align_corners)
    )


def adaptive_avg_pool(x, out_size):
    B, H, W, C = x.shape
    return _apply_hw_matrices(
        x, _adaptive_pool_matrix(out_size, H), _adaptive_pool_matrix(out_size, W)
    )


# --------------------------------------------------------------------------- #
# Parameter init (deterministic, synthetic) — BN scale folded into the weights #
# --------------------------------------------------------------------------- #
def init_conv_module(key, cin, cout, k):
    k1, k2, k3 = jax.random.split(key, 3)
    if k == 1:
        w = jax.random.normal(k1, (cin, cout), jnp.float32) * 0.05
    else:
        w = jax.random.normal(k1, (k, k, cin, cout), jnp.float32) * 0.05
    gamma = 1.0 + 0.1 * jax.random.normal(k2, (cout,), jnp.float32)
    beta = 0.1 * jax.random.normal(k3, (cout,), jnp.float32)
    eps = 1e-5
    # BatchNorm2d (eval) with running_mean=0, running_var=1 -> scale/bias fold.
    scale = gamma / jnp.sqrt(1.0 + eps)
    w_folded = w * scale           # fold scale into output-channel columns
    bias = beta
    return (w_folded, bias)


def init_uper_head(key, in_channels, channel, num_classes, scales):
    keys = jax.random.split(key, 4 + len(scales) + 2 * (len(in_channels) - 1) + 2)
    it = iter(keys)
    params = {}
    stage_params = [init_conv_module(next(it), in_channels[-1], channel, 1) for _ in scales]
    ppm_bottleneck = init_conv_module(
        next(it), in_channels[-1] + channel * len(scales), channel, 3
    )
    params["ppm"] = (stage_params, ppm_bottleneck, scales)
    params["fpn_in"] = [init_conv_module(next(it), c, channel, 1) for c in in_channels[:-1]]
    params["fpn_out"] = [init_conv_module(next(it), channel, channel, 3) for _ in in_channels[:-1]]
    params["bottleneck"] = init_conv_module(next(it), len(in_channels) * channel, channel, 3)
    kw, kb = next(it), next(it)
    w_seg = jax.random.normal(kw, (channel, num_classes), jnp.float32) * 0.05
    b_seg = 0.1 * jax.random.normal(kb, (num_classes,), jnp.float32)
    params["conv_seg"] = (w_seg, b_seg)
    return params


# --------------------------------------------------------------------------- #
# Forward pass (matches UperHead.forward semantics)                            #
# --------------------------------------------------------------------------- #
def ppm_forward(x, ppm_params):
    stage_params, bottleneck_params, scales = ppm_params
    outs = []
    for scale_sz, sp in zip(scales, stage_params):
        p = adaptive_avg_pool(x, scale_sz)
        p = conv1x1_module(p, sp)          # tiny M -> XLA fast path inside
        p = resize_bilinear(p, x.shape[1:3], align_corners=True)
        outs.append(p)
    outs = [x] + outs[::-1]
    return conv3x3_module(jnp.concatenate(outs, axis=-1), bottleneck_params)


def uper_head_forward(features_nchw, params):
    # NCHW -> NHWC, bf16 activations between stages (f32 MXU accumulation inside)
    feats = [jnp.transpose(f, (0, 2, 3, 1)).astype(jnp.bfloat16) for f in features_nchw]

    f = ppm_forward(feats[-1], params["ppm"])
    fpn_features = [f]
    for i in reversed(range(len(feats) - 1)):
        feature = conv1x1_module(feats[i], params["fpn_in"][i])
        f = feature + resize_bilinear(f, feature.shape[1:3], align_corners=False)
        fpn_features.append(conv3x3_module(f, params["fpn_out"][i]))
    fpn_features.reverse()

    target_hw = fpn_features[0].shape[1:3]
    for i in range(1, len(feats)):
        fpn_features[i] = resize_bilinear(fpn_features[i], target_hw, align_corners=False)

    out = conv3x3_module(jnp.concatenate(fpn_features, axis=-1), params["bottleneck"])

    # Dropout2d(p=0.1) is identity at inference time (eval mode).
    w_seg, b_seg = params["conv_seg"]
    B, H, W, C = out.shape
    seg = fused_matmul(out.reshape(B * H * W, C), w_seg, b_seg, relu=False,
                       out_dtype=jnp.float32).reshape(B, H, W, -1)
    return jnp.transpose(seg, (0, 3, 1, 2))  # back to NCHW


# --------------------------------------------------------------------------- #
if __name__ == "__main__":
    key = jax.random.PRNGKey(0)
    in_channels = (4, 8, 16, 32)
    channel = 32
    num_classes = 6
    scales = (1, 2, 3, 6)
    B = 2
    spatials = [(16, 16), (8, 8), (4, 4), (2, 2)]

    pkey, fkey = jax.random.split(key)
    params = init_uper_head(pkey, in_channels, channel, num_classes, scales)

    fkeys = jax.random.split(fkey, len(in_channels))
    features = [
        jax.random.normal(fkeys[i], (B, in_channels[i], *spatials[i]), jnp.float32)
        for i in range(len(in_channels))
    ]

    out = uper_head_forward(features, params)
    out = jax.block_until_ready(out)
    assert out.shape == (B, num_classes, *spatials[0]), out.shape
    assert bool(jnp.all(jnp.isfinite(out)))
    print("KERNEL_OK")
</pallas_src>

<mosaic_0001>
module attributes {stable_mosaic.version = 11 : i64} {
  func.func @_conv3x3_kernel(%arg0: i32, %arg1: memref<1x18x160xbf16, #tpu.memory_space<vmem>>, %arg2: memref<9x160x128xbf16, #tpu.memory_space<vmem>>, %arg3: memref<1x128xf32, #tpu.memory_space<vmem>>, %arg4: memref<1x8x128xbf16, #tpu.memory_space<vmem>>, %arg5: memref<8x128xf32, #tpu.memory_space<vmem>>) attributes {dimension_semantics = [#tpu.dimension_semantics<parallel>], iteration_bounds = array<i64: 2>, scalar_prefetch = 0 : i64, scratch_operands = 1 : i64, tpu.core_type = #tpu.core_type<tc>, window_params = [{transform_indices = @transform_0, window_bounds = array<i64: 1, 18, 160>}, {pipeline_mode = #tpu.pipeline_mode<synchronous>, transform_indices = @transform_1, window_bounds = array<i64: 9, 160, 128>}, {pipeline_mode = #tpu.pipeline_mode<synchronous>, transform_indices = @transform_2, window_bounds = array<i64: 1, 128>}, {transform_indices = @transform_3, window_bounds = array<i64: 1, 8, 128>}]} {
    %cst = arith.constant 0.000000e+00 : f32
    %0 = vector.broadcast %cst : f32 to vector<8x128xf32>
    %c0 = arith.constant 0 : index
    %c0_0 = arith.constant 0 : index
    %1 = vector.load %arg5[%c0, %c0_0] : memref<8x128xf32, #tpu.memory_space<vmem>>, vector<8x128xf32>
    tpu.vector_store %arg5[%c0, %c0_0], %0 {strides = array<i32>} : memref<8x128xf32, #tpu.memory_space<vmem>>, vector<8x128xf32>,
    %c0_1 = arith.constant 0 : index
    %c0_2 = arith.constant 0 : index
    %2 = vector.load %arg5[%c0_1, %c0_2] : memref<8x128xf32, #tpu.memory_space<vmem>>, vector<8x128xf32>
    %c0_3 = arith.constant 0 : index
    %c0_4 = arith.constant 0 : index
    %c0_5 = arith.constant 0 : index
    %3 = vector.load %arg1[%c0_3, %c0_4, %c0_5] : memref<1x18x160xbf16, #tpu.memory_space<vmem>>, vector<1x8x160xbf16>
    %4 = vector.shape_cast %3 : vector<1x8x160xbf16> to vector<8x160xbf16>
    %c0_6 = arith.constant 0 : index
    %c0_7 = arith.constant 0 : index
    %c0_8 = arith.constant 0 : index
    %5 = vector.load %arg2[%c0_6, %c0_7, %c0_8] : memref<9x160x128xbf16, #tpu.memory_space<vmem>>, vector<1x160x128xbf16>
    %6 = vector.shape_cast %5 : vector<1x160x128xbf16> to vector<160x128xbf16>
    %cst_9 = arith.constant dense<0.000000e+00> : vector<8x128xf32>
    %7 = tpu.matmul %4, %6, %cst_9 {dimension_numbers = #tpu.dot_dimension_numbers<[1], [0], [0], [1], [0, 0, 1, 1], [], []>} : vector<8x160xbf16>, vector<160x128xbf16>, vector<8x128xf32> -> vector<8x128xf32>
    %8 = arith.addf %2, %7 : vector<8x128xf32>
    %c0_10 = arith.constant 0 : index
    %c0_11 = arith.constant 0 : index
    %9 = vector.load %arg5[%c0_10, %c0_11] : memref<8x128xf32, #tpu.memory_space<vmem>>, vector<8x128xf32>
    tpu.vector_store %arg5[%c0_10, %c0_11], %8 {strides = array<i32>} : memref<8x128xf32, #tpu.memory_space<vmem>>, vector<8x128xf32>,
    %c0_12 = arith.constant 0 : index
    %c0_13 = arith.constant 0 : index
    %10 = vector.load %arg5[%c0_12, %c0_13] : memref<8x128xf32, #tpu.memory_space<vmem>>, vector<8x128xf32>
    %c0_14 = arith.constant 0 : index
    %c1 = arith.constant 1 : index
    %c0_15 = arith.constant 0 : index
    %11 = vector.load %arg1[%c0_14, %c1, %c0_15] : memref<1x18x160xbf16, #tpu.memory_space<vmem>>, vector<1x8x160xbf16>
    %12 = vector.shape_cast %11 : vector<1x8x160xbf16> to vector<8x160xbf16>
    %c1_16 = arith.constant 1 : index
    %c0_17 = arith.constant 0 : index
    %c0_18 = arith.constant 0 : index
    %13 = vector.load %arg2[%c1_16, %c0_17, %c0_18] : memref<9x160x128xbf16, #tpu.memory_space<vmem>>, vector<1x160x128xbf16>
    %14 = vector.shape_cast %13 : vector<1x160x128xbf16> to vector<160x128xbf16>
    %cst_19 = arith.constant dense<0.000000e+00> : vector<8x128xf32>
    %15 = tpu.matmul %12, %14, %cst_19 {dimension_numbers = #tpu.dot_dimension_numbers<[1], [0], [0], [1], [0, 0, 1, 1], [], []>} : vector<8x160xbf16>, vector<160x128xbf16>, vector<8x128xf32> -> vector<8x128xf32>
    %16 = arith.addf %10, %15 : vector<8x128xf32>
    %c0_20 = arith.constant 0 : index
    %c0_21 = arith.constant 0 : index
    %17 = vector.load %arg5[%c0_20, %c0_21] : memref<8x128xf32, #tpu.memory_space<vmem>>, vector<8x128xf32>
    tpu.vector_store %arg5[%c0_20, %c0_21], %16 {strides = array<i32>} : memref<8x128xf32, #tpu.memory_space<vmem>>, vector<8x128xf32>,
    %c0_22 = arith.constant 0 : index
    %c0_23 = arith.constant 0 : index
    %18 = vector.load %arg5[%c0_22, %c0_23] : memref<8x128xf32, #tpu.memory_space<vmem>>, vector<8x128xf32>
    %c0_24 = arith.constant 0 : index
    %c2 = arith.constant 2 : index
    %c0_25 = arith.constant 0 : index
    %19 = vector.load %arg1[%c0_24, %c2, %c0_25] : memref<1x18x160xbf16, #tpu.memory_space<vmem>>, vector<1x8x160xbf16>
    %20 = vector.shape_cast %19 : vector<1x8x160xbf16> to vector<8x160xbf16>
    %c2_26 = arith.constant 2 : index
    %c0_27 = arith.constant 0 : index
    %c0_28 = arith.constant 0 : index
    %21 = vector.load %arg2[%c2_26, %c0_27, %c0_28] : memref<9x160x128xbf16, #tpu.memory_space<vmem>>, vector<1x160x128xbf16>
    %22 = vector.shape_cast %21 : vector<1x160x128xbf16> to vector<160x128xbf16>
    %cst_29 = arith.constant dense<0.000000e+00> : vector<8x128xf32>
    %23 = tpu.matmul %20, %22, %cst_29 {dimension_numbers = #tpu.dot_dimension_numbers<[1], [0], [0], [1], [0, 0, 1, 1], [], []>} : vector<8x160xbf16>, vector<160x128xbf16>, vector<8x128xf32> -> vector<8x128xf32>
    %24 = arith.addf %18, %23 : vector<8x128xf32>
    %c0_30 = arith.constant 0 : index
    %c0_31 = arith.constant 0 : index
    %25 = vector.load %arg5[%c0_30, %c0_31] : memref<8x128xf32, #tpu.memory_space<vmem>>, vector<8x128xf32>
    tpu.vector_store %arg5[%c0_30, %c0_31], %24 {strides = array<i32>} : memref<8x128xf32, #tpu.memory_space<vmem>>, vector<8x128xf32>,
    %c0_32 = arith.constant 0 : index
    %c0_33 = arith.constant 0 : index
    %26 = vector.load %arg5[%c0_32, %c0_33] : memref<8x128xf32, #tpu.memory_space<vmem>>, vector<8x128xf32>
    %c0_34 = arith.constant 0 : index
    %c4 = arith.constant 4 : index
    %c0_35 = arith.constant 0 : index
    %27 = vector.load %arg1[%c0_34, %c4, %c0_35] : memref<1x18x160xbf16, #tpu.memory_space<vmem>>, vector<1x8x160xbf16>
    %28 = vector.shape_cast %27 : vector<1x8x160xbf16> to vector<8x160xbf16>
    %c3 = arith.constant 3 : index
    %c0_36 = arith.constant 0 : index
    %c0_37 = arith.constant 0 : index
    %29 = vector.load %arg2[%c3, %c0_36, %c0_37] : memref<9x160x128xbf16, #tpu.memory_space<vmem>>, vector<1x160x128xbf16>
    %30 = vector.shape_cast %29 : vector<1x160x128xbf16> to vector<160x128xbf16>
    %cst_38 = arith.constant dense<0.000000e+00> : vector<8x128xf32>
    %31 = tpu.matmul %28, %30, %cst_38 {dimension_numbers = #tpu.dot_dimension_numbers<[1], [0], [0], [1], [0, 0, 1, 1], [], []>} : vector<8x160xbf16>, vector<160x128xbf16>, vector<8x128xf32> -> vector<8x128xf32>
    %32 = arith.addf %26, %31 : vector<8x128xf32>
    %c0_39 = arith.constant 0 : index
    %c0_40 = arith.constant 0 : index
    %33 = vector.load %arg5[%c0_39, %c0_40] : memref<8x128xf32, #tpu.memory_space<vmem>>, vector<8x128xf32>
    tpu.vector_store %arg5[%c0_39, %c0_40], %32 {strides = array<i32>} : memref<8x128xf32, #tpu.memory_space<vmem>>, vector<8x128xf32>,
    %c0_41 = arith.constant 0 : index
    %c0_42 = arith.constant 0 : index
    %34 = vector.load %arg5[%c0_41, %c0_42] : memref<8x128xf32, #tpu.memory_space<vmem>>, vector<8x128xf32>
    %c0_43 = arith.constant 0 : index
    %c5 = arith.constant 5 : index
    %c0_44 = arith.constant 0 : index
    %35 = vector.load %arg1[%c0_43, %c5, %c0_44] : memref<1x18x160xbf16, #tpu.memory_space<vmem>>, vector<1x8x160xbf16>
    %36 = vector.shape_cast %35 : vector<1x8x160xbf16> to vector<8x160xbf16>
    %c4_45 = arith.constant 4 : index
    %c0_46 = arith.constant 0 : index
    %c0_47 = arith.constant 0 : index
    %37 = vector.load %arg2[%c4_45, %c0_46, %c0_47] : memref<9x160x128xbf16, #tpu.memory_space<vmem>>, vector<1x160x128xbf16>
    %38 = vector.shape_cast %37 : vector<1x160x128xbf16> to vector<160x128xbf16>
    %cst_48 = arith.constant dense<0.000000e+00> : vector<8x128xf32>
    %39 = tpu.matmul %36, %38, %cst_48 {dimension_numbers = #tpu.dot_dimension_numbers<[1], [0], [0], [1], [0, 0, 1, 1], [], []>} : vector<8x160xbf16>, vector<160x128xbf16>, vector<8x128xf32> -> vector<8x128xf32>
    %40 = arith.addf %34, %39 : vector<8x128xf32>
    %c0_49 = arith.constant 0 : index
    %c0_50 = arith.constant 0 : index
    %41 = vector.load %arg5[%c0_49, %c0_50] : memref<8x128xf32, #tpu.memory_space<vmem>>, vector<8x128xf32>
    tpu.vector_store %arg5[%c0_49, %c0_50], %40 {strides = array<i32>} : memref<8x128xf32, #tpu.memory_space<vmem>>, vector<8x128xf32>,
    %c0_51 = arith.constant 0 : index
    %c0_52 = arith.constant 0 : index
    %42 = vector.load %arg5[%c0_51, %c0_52] : memref<8x128xf32, #tpu.memory_space<vmem>>, vector<8x128xf32>
    %c0_53 = arith.constant 0 : index
    %c6 = arith.constant 6 : index
    %c0_54 = arith.constant 0 : index
    %43 = vector.load %arg1[%c0_53, %c6, %c0_54] : memref<1x18x160xbf16, #tpu.memory_space<vmem>>, vector<1x8x160xbf16>
    %44 = vector.shape_cast %43 : vector<1x8x160xbf16> to vector<8x160xbf16>
    %c5_55 = arith.constant 5 : index
    %c0_56 = arith.constant 0 : index
    %c0_57 = arith.constant 0 : index
    %45 = vector.load %arg2[%c5_55, %c0_56, %c0_57] : memref<9x160x128xbf16, #tpu.memory_space<vmem>>, vector<1x160x128xbf16>
    %46 = vector.shape_cast %45 : vector<1x160x128xbf16> to vector<160x128xbf16>
    %cst_58 = arith.constant dense<0.000000e+00> : vector<8x128xf32>
    %47 = tpu.matmul %44, %46, %cst_58 {dimension_numbers = #tpu.dot_dimension_numbers<[1], [0], [0], [1], [0, 0, 1, 1], [], []>} : vector<8x160xbf16>, vector<160x128xbf16>, vector<8x128xf32> -> vector<8x128xf32>
    %48 = arith.addf %42, %47 : vector<8x128xf32>
    %c0_59 = arith.constant 0 : index
    %c0_60 = arith.constant 0 : index
    %49 = vector.load %arg5[%c0_59, %c0_60] : memref<8x128xf32, #tpu.memory_space<vmem>>, vector<8x128xf32>
    tpu.vector_store %arg5[%c0_59, %c0_60], %48 {strides = array<i32>} : memref<8x128xf32, #tpu.memory_space<vmem>>, vector<8x128xf32>,
    %c0_61 = arith.constant 0 : index
    %c0_62 = arith.constant 0 : index
    %50 = vector.load %arg5[%c0_61, %c0_62] : memref<8x128xf32, #tpu.memory_space<vmem>>, vector<8x128xf32>
    %c0_63 = arith.constant 0 : index
    %c8 = arith.constant 8 : index
    %c0_64 = arith.constant 0 : index
    %51 = vector.load %arg1[%c0_63, %c8, %c0_64] : memref<1x18x160xbf16, #tpu.memory_space<vmem>>, vector<1x8x160xbf16>
    %52 = vector.shape_cast %51 : vector<1x8x160xbf16> to vector<8x160xbf16>
    %c6_65 = arith.constant 6 : index
    %c0_66 = arith.constant 0 : index
    %c0_67 = arith.constant 0 : index
    %53 = vector.load %arg2[%c6_65, %c0_66, %c0_67] : memref<9x160x128xbf16, #tpu.memory_space<vmem>>, vector<1x160x128xbf16>
    %54 = vector.shape_cast %53 : vector<1x160x128xbf16> to vector<160x128xbf16>
    %cst_68 = arith.constant dense<0.000000e+00> : vector<8x128xf32>
    %55 = tpu.matmul %52, %54, %cst_68 {dimension_numbers = #tpu.dot_dimension_numbers<[1], [0], [0], [1], [0, 0, 1, 1], [], []>} : vector<8x160xbf16>, vector<160x128xbf16>, vector<8x128xf32> -> vector<8x128xf32>
    %56 = arith.addf %50, %55 : vector<8x128xf32>
    %c0_69 = arith.constant 0 : index
    %c0_70 = arith.constant 0 : index
    %57 = vector.load %arg5[%c0_69, %c0_70] : memref<8x128xf32, #tpu.memory_space<vmem>>, vector<8x128xf32>
    tpu.vector_store %arg5[%c0_69, %c0_70], %56 {strides = array<i32>} : memref<8x128xf32, #tpu.memory_space<vmem>>, vector<8x128xf32>,
    %c0_71 = arith.constant 0 : index
    %c0_72 = arith.constant 0 : index
    %58 = vector.load %arg5[%c0_71, %c0_72] : memref<8x128xf32, #tpu.memory_space<vmem>>, vector<8x128xf32>
    %c0_73 = arith.constant 0 : index
    %c9 = arith.constant 9 : index
    %c0_74 = arith.constant 0 : index
    %59 = vector.load %arg1[%c0_73, %c9, %c0_74] : memref<1x18x160xbf16, #tpu.memory_space<vmem>>, vector<1x8x160xbf16>
    %60 = vector.shape_cast %59 : vector<1x8x160xbf16> to vector<8x160xbf16>
    %c7 = arith.constant 7 : index
    %c0_75 = arith.constant 0 : index
    %c0_76 = arith.constant 0 : index
    %61 = vector.load %arg2[%c7, %c0_75, %c0_76] : memref<9x160x128xbf16, #tpu.memory_space<vmem>>, vector<1x160x128xbf16>
    %62 = vector.shape_cast %61 : vector<1x160x128xbf16> to vector<160x128xbf16>
    %cst_77 = arith.constant dense<0.000000e+00> : vector<8x128xf32>
    %63 = tpu.matmul %60, %62, %cst_77 {dimension_numbers = #tpu.dot_dimension_numbers<[1], [0], [0], [1], [0, 0, 1, 1], [], []>} : vector<8x160xbf16>, vector<160x128xbf16>, vector<8x128xf32> -> vector<8x128xf32>
    %64 = arith.addf %58, %63 : vector<8x128xf32>
    %c0_78 = arith.constant 0 : index
    %c0_79 = arith.constant 0 : index
    %65 = vector.load %arg5[%c0_78, %c0_79] : memref<8x128xf32, #tpu.memory_space<vmem>>, vector<8x128xf32>
    tpu.vector_store %arg5[%c0_78, %c0_79], %64 {strides = array<i32>} : memref<8x128xf32, #tpu.memory_space<vmem>>, vector<8x128xf32>,
    %c0_80 = arith.constant 0 : index
    %c0_81 = arith.constant 0 : index
    %66 = vector.load %arg5[%c0_80, %c0_81] : memref<8x128xf32, #tpu.memory_space<vmem>>, vector<8x128xf32>
    %c0_82 = arith.constant 0 : index
    %c10 = arith.constant 10 : index
    %c0_83 = arith.constant 0 : index
    %67 = vector.load %arg1[%c0_82, %c10, %c0_83] : memref<1x18x160xbf16, #tpu.memory_space<vmem>>, vector<1x8x160xbf16>
    %68 = vector.shape_cast %67 : vector<1x8x160xbf16> to vector<8x160xbf16>
    %c8_84 = arith.constant 8 : index
    %c0_85 = arith.constant 0 : index
    %c0_86 = arith.constant 0 : index
    %69 = vector.load %arg2[%c8_84, %c0_85, %c0_86] : memref<9x160x128xbf16, #tpu.memory_space<vmem>>, vector<1x160x128xbf16>
    %70 = vector.shape_cast %69 : vector<1x160x128xbf16> to vector<160x128xbf16>
    %cst_87 = arith.constant dense<0.000000e+00> : vector<8x128xf32>
    %71 = tpu.matmul %68, %70, %cst_87 {dimension_numbers = #tpu.dot_dimension_numbers<[1], [0], [0], [1], [0, 0, 1, 1], [], []>} : vector<8x160xbf16>, vector<160x128xbf16>, vector<8x128xf32> -> vector<8x128xf32>
    %72 = arith.addf %66, %71 : vector<8x128xf32>
    %c0_88 = arith.constant 0 : index
    %c0_89 = arith.constant 0 : index
    %73 = vector.load %arg5[%c0_88, %c0_89] : memref<8x128xf32, #tpu.memory_space<vmem>>, vector<8x128xf32>
    tpu.vector_store %arg5[%c0_88, %c0_89], %72 {strides = array<i32>} : memref<8x128xf32, #tpu.memory_space<vmem>>, vector<8x128xf32>,
    %c0_90 = arith.constant 0 : index
    %c0_91 = arith.constant 0 : index
    %74 = vector.load %arg5[%c0_90, %c0_91] : memref<8x128xf32, #tpu.memory_space<vmem>>, vector<8x128xf32>
    %c0_92 = arith.constant 0 : index
    %c0_93 = arith.constant 0 : index
    %75 = vector.load %arg3[%c0_92, %c0_93] : memref<1x128xf32, #tpu.memory_space<vmem>>, vector<1x128xf32>
    %76 = vector.broadcast %75 : vector<1x128xf32> to vector<8x128xf32>
    %77 = arith.addf %74, %76 : vector<8x128xf32>
    %cst_94 = arith.constant 0.000000e+00 : f32
    %78 = vector.broadcast %cst_94 : f32 to vector<8x128xf32>
    %79 = arith.maximumf %77, %78 : vector<8x128xf32>
    %80 = arith.truncf %79 : vector<8x128xf32> to vector<8x128xbf16>
    %c0_95 = arith.constant 0 : index
    %c0_96 = arith.constant 0 : index
    %c0_97 = arith.constant 0 : index
    %81 = vector.load %arg4[%c0_95, %c0_96, %c0_97] : memref<1x8x128xbf16, #tpu.memory_space<vmem>>, vector<1x8x128xbf16>
    %82 = vector.shape_cast %81 : vector<1x8x128xbf16> to vector<8x128xbf16>
    %83 = vector.shape_cast %80 : vector<8x128xbf16> to vector<1x8x128xbf16>
    tpu.vector_store %arg4[%c0_95, %c0_96, %c0_97], %83 {strides = array<i32>} : memref<1x8x128xbf16, #tpu.memory_space<vmem>>, vector<1x8x128xbf16>,
    return
  }
  func.func @transform_0(%arg0: i32) -> (i32, i32, i32) {
    %c0_i32 = arith.constant 0 : i32
    %c0_i32_0 = arith.constant 0 : i32
    %c0_i32_1 = arith.constant 0 : i32
    return %arg0, %c0_i32, %c0_i32_0 : i32, i32, i32
  }
  func.func @transform_1(%arg0: i32) -> (i32, i32, i32) {
    %c0_i32 = arith.constant 0 : i32
    %c0_i32_0 = arith.constant 0 : i32
    %c0_i32_1 = arith.constant 0 : i32
    %c0_i32_2 = arith.constant 0 : i32
    return %c0_i32, %c0_i32_0, %c0_i32_1 : i32, i32, i32
  }
  func.func @transform_2(%arg0: i32) -> (i32, i32) {
    %c0_i32 = arith.constant 0 : i32
    %c0_i32_0 = arith.constant 0 : i32
    %c0_i32_1 = arith.constant 0 : i32
    return %c0_i32, %c0_i32_0 : i32, i32
  }
  func.func @transform_3(%arg0: i32) -> (i32, i32, i32) {
    %c0_i32 = arith.constant 0 : i32
    %c0_i32_0 = arith.constant 0 : i32
    %c0_i32_1 = arith.constant 0 : i32
    return %arg0, %c0_i32, %c0_i32_0 : i32, i32, i32
  }
}

</mosaic_0001>

<llo_original>
// kernel: tpu_custom_call.1
$region0: #{tpu_custom_call.1}
  #allocation0 [shape = 'u32[]', space=smem, size = 0x4, offset = 0x4, fixed_abs, tag = 'smem constant byte address 0x4 - core index']
  #allocation1 [shape = 'u32[144,128]{1,0:T(1,128)}', space=vmem, size = 0x12000, scoped, tag = 'internal scratch']
  #allocation2 [shape = 'f32[8,128]{1,0:T(8,128)}', space=vmem, size = 0x1000, scoped, tag = 'scratch operand']
  %s0 = inlined_call_operand.vmem [shape: bf16[2,18,160], index: 0, kind: input, shape index: {}]
  %s1 = inlined_call_operand.hbm [shape: bf16[9,160,128], index: 1, kind: input, shape index: {}]
  %s2 = inlined_call_operand.vmem [shape: f32[1,128], index: 2, kind: input, shape index: {}]
  %s3 = inlined_call_operand.hbm [shape: bf16[2,8,128], index: 3, kind: output, shape index: {}]
  %s4 = sld [smem:[#allocation0]]
  $region49: #{tpu_custom_call.1} parent=0
    _
  %s6 = ssub.s32 1, %s4
  %s7 = scalar_select 0, %s6, %s4
  $region1: #{tpu_custom_call.1} parent=0
    #allocation3 [shape = 'u8[368640]{0}', space=vmem, size = 0x5a000, scoped, tag = 'input window, operand 1, single buffered']
    #allocation4 [shape = 's32[2]{0}', space=sflag, size = 0x8, scoped, tag = 'scoped memory for tpu_custom_call.1']
    #allocation5 [shape = 's32[2]{0}', space=sflag, size = 0x8, scoped, tag = 'scoped memory for tpu_custom_call.1']
    #allocation6 [shape = 'u8[4096]{0}', space=vmem, size = 0x1000, scoped, tag = 'output window, operand 0']
    %8 = vsyncpa [#allocation4], 0
    %9 = vsyncpa [#allocation5], 0
    %s10 = scalar_lea.sflag [#allocation5], 1
    %11 = vsyncpa %s10, 0
    loop: start=0, step=1, limit=4
    $region2: #{tpu_custom_call.1} parent=1 // loop_pre_header
      _
    $region3: #{tpu_custom_call.1} parent=1 // loop_header
      %s13 = sphi 0, %s17
      %p14 = scmp.ge.s32.totalorder %s13, 4
      %s23 = sphi 0, %s25
      %s26 = sphi 0, %s23
      %s27 = sphi 0, %s26
      %s43 = sphi 0, %s27
      %s47 = sphi 0, %s47
      %s49 = sphi 0, %s47
      %s50 = sphi 0, %s49
      %s64 = sphi 0, %s50
      %s68 = sphi 0, %s68
      %s70 = sphi 0, %s68
      %s71 = sphi 0, %s70
      %s85 = sphi 0, %s71
      %s91 = sphi 0, %s93
      %s94 = sphi 0, %s91
      %s95 = sphi 0, %s94
      %s111 = sphi 0, %s95
    $region4: #{tpu_custom_call.1} parent=1 // loop_header_branch
      %16 = sbr.rel (%p14) target = $region8
    $region5: #{tpu_custom_call.1} parent=1 // loop_body
      %s18 = ssub.s32 %s13, 1
      %s19 = ssub.s32 %s13, 2
      %s20 = sadd.s32 %s13, 1
      %s21 = ssub.s32 %s13, %s20
      %p22 = scmp.eq.s32.totalorder %s21, 0
      %s24 = sadd.s32 %s23, 1
      %s25 = scalar_select %p22, %s23, %s24
      %p28 = pneg %p22
      %p29 = scmp.eq.s32.totalorder %s13, 1
      %p30 = por %p28, %p29
      %p31 = scmp.ne.s32.totalorder %s23, %s26
      %p32 = scmp.eq.s32.totalorder %s13, 0
      %p33 = por %p31, %p32
      %p34 = scmp.ne.s32.totalorder %s23, %s26
      %p35 = scmp.eq.s32.totalorder %s18, 1
      %p36 = por %p34, %p35
      %p37 = scmp.ne.s32.totalorder %s26, %s27
      %p38 = scmp.eq.s32.totalorder %s18, 0
      %p39 = por %p37, %p38
      %p40 = scmp.ne.s32.totalorder %s26, %s27
      %p41 = scmp.eq.s32.totalorder %s19, 1
      %p42 = por %p40, %p41
      %p44 = scmp.ne.s32.totalorder %s27, %s43
      %p45 = scmp.eq.s32.totalorder %s19, 0
      %p46 = por %p44, %p45
      %s48 = sadd.s32 %s47, 1
      %p51 = scmp.eq.s32.totalorder %s13, 1
      %p52 = scmp.ne.s32.totalorder %s47, %s49
      %p53 = scmp.eq.s32.totalorder %s13, 0
      %p54 = por %p52, %p53
      %p55 = scmp.ne.s32.totalorder %s47, %s49
      %p56 = scmp.eq.s32.totalorder %s18, 1
      %p57 = por %p55, %p56
      %p58 = scmp.ne.s32.totalorder %s49, %s50
      %p59 = scmp.eq.s32.totalorder %s18, 0
      %p60 = por %p58, %p59
      %p61 = scmp.ne.s32.totalorder %s49, %s50
      %p62 = scmp.eq.s32.totalorder %s19, 1
      %p63 = por %p61, %p62
      %p65 = scmp.ne.s32.totalorder %s50, %s64
      %p66 = scmp.eq.s32.totalorder %s19, 0
      %p67 = por %p65, %p66
      %s69 = sadd.s32 %s68, 1
      %p72 = scmp.eq.s32.totalorder %s13, 1
      %p73 = scmp.ne.s32.totalorder %s68, %s70
      %p74 = scmp.eq.s32.totalorder %s13, 0
      %p75 = por %p73, %p74
      %p76 = scmp.ne.s32.totalorder %s68, %s70
      %p77 = scmp.eq.s32.totalorder %s18, 1
      %p78 = por %p76, %p77
      %p79 = scmp.ne.s32.totalorder %s70, %s71
      %p80 = scmp.eq.s32.totalorder %s18, 0
      %p81 = por %p79, %p80
      %p82 = scmp.ne.s32.totalorder %s70, %s71
      %p83 = scmp.eq.s32.totalorder %s19, 1
      %p84 = por %p82, %p83
      %p86 = scmp.ne.s32.totalorder %s71, %s85
      %p87 = scmp.eq.s32.totalorder %s19, 0
      %p88 = por %p86, %p87
      %s89 = ssub.s32 %s13, %s20
      %p90 = scmp.eq.s32.totalorder %s89, 0
      %s92 = sadd.s32 %s91, 1
      %s93 = scalar_select %p90, %s91, %s92
      %p96 = pneg %p90
      %p97 = scmp.eq.s32.totalorder %s13, 1
      %p98 = por %p96, %p97
      %p99 = scmp.ne.s32.totalorder %s91, %s94
      %p100 = scmp.eq.s32.totalorder %s13, 0
      %p101 = por %p99, %p100
      %p102 = scmp.ne.s32.totalorder %s91, %s94
      %p103 = scmp.eq.s32.totalorder %s18, 1
      %p104 = por %p102, %p103
      %p105 = scmp.ne.s32.totalorder %s94, %s95
      %p106 = scmp.eq.s32.totalorder %s18, 0
      %p107 = por %p105, %p106
      %p108 = scmp.ne.s32.totalorder %s94, %s95
      %p109 = scmp.eq.s32.totalorder %s19, 1
      %p110 = por %p108, %p109
      %p112 = scmp.ne.s32.totalorder %s95, %s111
      %p113 = scmp.eq.s32.totalorder %s19, 0
      %p114 = por %p112, %p113
      %p115 = scmp.le.s32.totalorder 1, %s13
      %p116 = scmp.lt.s32.totalorder %s13, 3
      %p117 = pnand %p115, %p116
      %p118 = pneg %p117
      // Predicated region
      $region9: #{tpu_custom_call.1} parent=5 // pred_check
        _
      $region10: #{tpu_custom_call.1} parent=5 // pred_check_branch
        %120 = sbr.rel (%p117) target = $region12
      $region11: #{tpu_custom_call.1} parent=5 // pred_region
        %s121 = ssub.s32 %s13, 1
        // Predicated region
        $region13: #{tpu_custom_call.1} parent=11 // pred_check
          %p122 = pneg %p60
        $region14: #{tpu_custom_call.1} parent=11 // pred_check_branch
          %124 = sbr.rel (%p122) target = $region16
        $region15: #{tpu_custom_call.1} parent=11 // pred_region
          %s126 = ssub.s32 11520, 11520
          %127 = vsyncadd [#allocation4], %s126
          %s128 = sshll.u32 [#allocation3], 4
          %s129 = int_to_ptr.vmem [resolvable:$true] %s128
          %134 = dma.hbm_to_vmem [thread:$0]  %s1, 11520, %s129, [#allocation4], 64, 64, 4
        $region16: #{tpu_custom_call.1} parent=11 // pred_fallthru
          _
        // Predicated region
        $region17: #{tpu_custom_call.1} parent=11 // pred_check
          %p135 = pneg %p81
        $region18: #{tpu_custom_call.1} parent=11 // pred_check_branch
          %137 = sbr.rel (%p135) target = $region20
        $region19: #{tpu_custom_call.1} parent=11 // pred_region
          _
        $region20: #{tpu_custom_call.1} parent=11 // pred_fallthru
          _
      $region12: #{tpu_custom_call.1} parent=5 // pred_fallthru
        _
      %p138 = scmp.lt.s32.totalorder %s13, 2
      // Predicated region
      $region21: #{tpu_custom_call.1} parent=5 // pred_check
        %p139 = pneg %p138
      $region22: #{tpu_custom_call.1} parent=5 // pred_check_branch
        %141 = sbr.rel (%p139) target = $region24
      $region23: #{tpu_custom_call.1} parent=5 // pred_region
        // Predicated region
        $region25: #{tpu_custom_call.1} parent=23 // pred_check
          %p142 = pneg %p33
        $region26: #{tpu_custom_call.1} parent=23 // pred_check_branch
          %144 = sbr.rel (%p142) target = $region28
        $region27: #{tpu_custom_call.1} parent=23 // pred_region
          %p145 = scmp.lt.s32.totalorder %s13, 1
          %s146 = scalar_select %p145, %s13, 1
          %s147 = smul.addr %s146, 6
          %s148 = smul.addr %s147, 4
          %s149 = scalar_lea.vmem %s0, %s148
        $region28: #{tpu_custom_call.1} parent=23 // pred_fallthru
          _
      $region24: #{tpu_custom_call.1} parent=5 // pred_fallthru
        _
      %p150 = scmp.le.s32.totalorder 1, %s13
      %p151 = scmp.lt.s32.totalorder %s13, 3
      %p152 = pnand %p150, %p151
      %p153 = pneg %p152
      // Predicated region
      $region29: #{tpu_custom_call.1} parent=5 // pred_check
        _
      $region30: #{tpu_custom_call.1} parent=5 // pred_check_branch
        %155 = sbr.rel (%p152) target = $region32
      $region31: #{tpu_custom_call.1} parent=5 // pred_region
        %s156 = ssub.s32 %s13, 1
        // Predicated region
        $region33: #{tpu_custom_call.1} parent=31 // pred_check
          %p157 = pneg %p60
        $region34: #{tpu_custom_call.1} parent=31 // pred_check_branch
          %159 = sbr.rel (%p157) target = $region36
        $region35: #{tpu_custom_call.1} parent=31 // pred_region
          %160 = dma.done [#allocation4], 11520
        $region36: #{tpu_custom_call.1} parent=31 // pred_fallthru
          _
        %p161 = scmp.lt.s32.totalorder %s18, 1
        %s162 = scalar_select %p161, %s18, 1
        %s163 = smul.addr %s162, 6
        %s164 = smul.addr %s163, 4
        %s165 = scalar_lea.vmem %s0, %s164
        %p166 = pneg %p39
        %p167 = pneg %p36
        %p168 = pneg %p60
        %p169 = pneg %p57
        %p170 = pneg %p81
        %p171 = pneg %p78
        %p172 = pneg %p107
        %p173 = pneg %p104
        %s174 = sand.u32 %s94, 1
        %s175 = scalar_lea.sflag [#allocation5], %s174
        %s176 = sand.u32 %s94, 1
        %s177 = smul.addr %s176, 4
        %s178 = scalar_lea.vmem [#allocation6], %s177
        %p179 = scmp.lt.s32.totalorder %s18, 1
        %s180 = scalar_select %p179, %s18, 1
        %s181 = smul.addr %s180, 6
        %s182 = smul.addr %s181, 4
        %s183 = scalar_lea.vmem %s0, %s182
        %185 = vst [vmem:[#allocation2] sm:$0xff] 0.0
        %v186 = vld [vmem:[#allocation2] sm:$0xff]
        %v187 = vld [vmem:[%s183] sm:$0xff]
        %v188 = vld [vmem:[#allocation3] sm:$0xf]
        %v189 = vld [vmem:[#allocation3 + $0x4] sm:$0xf]
        %v190 = vld [vmem:[#allocation3 + $0x8] sm:$0xf]
        %v191 = vld [vmem:[#allocation3 + $0xc] sm:$0xf]
        %v192 = vld [vmem:[#allocation3 + $0x10] sm:$0xf]
        %v193 = vld [vmem:[#allocation3 + $0x14] sm:$0xf]
        %v194 = vld [vmem:[#allocation3 + $0x18] sm:$0xf]
        %v195 = vld [vmem:[#allocation3 + $0x1c] sm:$0xf]
        %v196 = vld [vmem:[#allocation3 + $0x20] sm:$0xf]
        %v197 = vld [vmem:[#allocation3 + $0x24] sm:$0xf]
        %v198 = vld [vmem:[#allocation3 + $0x28] sm:$0xf]
        %v199 = vld [vmem:[#allocation3 + $0x2c] sm:$0xf]
        %v200 = vld [vmem:[#allocation3 + $0x30] sm:$0xf]
        %v201 = vld [vmem:[#allocation3 + $0x34] sm:$0xf]
        %v202 = vld [vmem:[#allocation3 + $0x38] sm:$0xf]
        %v203 = vld [vmem:[#allocation3 + $0x3c] sm:$0xf]
        %v204 = vld [vmem:[#allocation3 + $0x40] sm:$0xf]
        %v205 = vld [vmem:[#allocation3 + $0x44] sm:$0xf]
        %v206 = vld [vmem:[#allocation3 + $0x48] sm:$0xf]
        %v207 = vld [vmem:[#allocation3 + $0x4c] sm:$0xf]
        %v209 = vunpack.c.l.b16 %v187
        %v210 = vunpack.c.h.b16 %v187
        %v211 = vpack.c.b16 %v209, %v209
        %v212 = vpack.c.b16 %v210, %v210
        %v234 = vunpack.c.l.b16 %v188
        %v235 = vunpack.c.l.b16 %v189
        %v236 = vunpack.c.l.b16 %v190
        %v237 = vunpack.c.l.b16 %v191
        %v238 = vunpack.c.l.b16 %v192
        %v239 = vunpack.c.l.b16 %v193
        %v240 = vunpack.c.l.b16 %v194
        %v241 = vunpack.c.l.b16 %v195
        %v242 = vunpack.c.l.b16 %v196
        %v243 = vunpack.c.l.b16 %v197
        %v244 = vunpack.c.l.b16 %v198
        %v245 = vunpack.c.l.b16 %v199
        %v246 = vunpack.c.l.b16 %v200
        %v247 = vunpack.c.l.b16 %v201
        %v248 = vunpack.c.l.b16 %v202
        %v249 = vunpack.c.l.b16 %v203
        %v250 = vunpack.c.l.b16 %v204
        %v251 = vunpack.c.l.b16 %v205
        %v252 = vunpack.c.l.b16 %v206
        %v253 = vunpack.c.l.b16 %v207
        %v254 = vpack.c.b16 %v235, %v234
        %v255 = vpack.c.b16 %v237, %v236
        %v256 = vpack.c.b16 %v239, %v238
        %v257 = vpack.c.b16 %v241, %v240
        %v258 = vpack.c.b16 %v243, %v242
        %v259 = vpack.c.b16 %v245, %v244
        %v260 = vpack.c.b16 %v247, %v246
        %v261 = vpack.c.b16 %v249, %v248
        %v262 = vpack.c.b16 %v251, %v250
        %v263 = vpack.c.b16 %v253, %v252
        %vm274 = vcmask 261120
        %v276 = vsel %vm274, %v212, 0
        %278 = vmatprep.subr.bf16.mxu0 0
        %279 = vmatpush1.bf16.msra.mxu0 %v254
        %280 = vmatprep.subr.bf16.mxu0 0
        %281 = vmatpush1.bf16.msra.mxu0 %v255
        %282 = vmatprep.subr.bf16.mxu0 0
        %283 = vmatpush1.bf16.msra.mxu0 %v256
        %284 = vmatprep.subr.bf16.mxu0 0
        %285 = vmatpush1.bf16.msra.mxu0 %v257
        %286 = vmatprep.subr.bf16.mxu0 0
        %287 = vmatpush1.bf16.msra.mxu0 %v258
        %288 = vmatprep.subr.bf16.mxu0 0
        %289 = vmatpush1.bf16.msra.mxu0 %v259
        %290 = vmatprep.subr.bf16.mxu0 0
        %291 = vmatpush1.bf16.msra.mxu0 %v260
        %292 = vmatprep.subr.bf16.mxu0 0
        %293 = vmatpush1.bf16.msra.mxu0 %v261
        %294 = vmatprep.subr.bf16.mxu0 0
        %295 = vmatpush1.bf16.msra.mxu0 %v262
        %296 = vmatprep.subr.bf16.mxu0 0
        %297 = vmatpush1.bf16.msra.mxu0 %v263
        %298 = vmatprep.subr.bf16.mxu0 0
        %299 = vmatpush1.bf16.msra.mxu0 0
        %300 = vmatprep.subr.bf16.mxu0 0
        %301 = vmatpush1.bf16.msra.mxu0 0
        %302 = vmatprep.subr.bf16.mxu0 0
        %303 = vmatpush1.bf16.msra.mxu0 0
        %304 = vmatprep.subr.bf16.mxu0 0
        %305 = vmatpush1.bf16.msra.mxu0 0
        %306 = vmatprep.subr.bf16.mxu0 0
        %307 = vmatpush1.bf16.msra.mxu0 0
        %308 = vmatprep.subr.bf16.mxu0 0
        %309 = vmatpush1.bf16.msra.mxu0 0
        %310 = vmatprep.mubr.bf16.mxu0 %v276
        %311 = vmatmul.mubr.bf16.gmra.mrb[0].mxu0 %v211
        %v312 = vpop.f32.mrb[0].mxu0
        %v313 = vadd.f32 0.0, %v312
        %v314 = vpop.f32.mrb[0].mxu0
        %v315 = vpop.f32.mrb[0].mxu0
        %v316 = vpop.f32.mrb[0].mxu0
        %317 = vdwg.mxu0
        %v318 = vadd.f32 %v186, %v313
        %319 = vst [vmem:[#allocation2] sm:$0xff] %v318
        %v320 = vld [vmem:[#allocation2] sm:$0xff]
        %v321 = vld [vmem:[%s183] sm:$0xff]
        %v322 = vld [vmem:[%s183 + $0x8] sm:$0x11]
        %s323 = scalar_lea.vmem [#allocation3], 80
        %v324 = vld [vmem:[%s323] sm:$0xf]
        %v325 = vld [vmem:[%s323 + $0x4] sm:$0xf]
        %v326 = vld [vmem:[%s323 + $0x8] sm:$0xf]
        %v327 = vld [vmem:[%s323 + $0xc] sm:$0xf]
        %v328 = vld [vmem:[%s323 + $0x10] sm:$0xf]
        %v329 = vld [vmem:[%s323 + $0x14] sm:$0xf]
        %v330 = vld [vmem:[%s323 + $0x18] sm:$0xf]
        %v331 = vld [vmem:[%s323 + $0x1c] sm:$0xf]
        %v332 = vld [vmem:[%s323 + $0x20] sm:$0xf]
        %v333 = vld [vmem:[%s323 + $0x24] sm:$0xf]
        %v334 = vld [vmem:[%s323 + $0x28] sm:$0xf]
        %v335 = vld [vmem:[%s323 + $0x2c] sm:$0xf]
        %v336 = vld [vmem:[%s323 + $0x30] sm:$0xf]
        %v337 = vld [vmem:[%s323 + $0x34] sm:$0xf]
        %v338 = vld [vmem:[%s323 + $0x38] sm:$0xf]
        %v339 = vld [vmem:[%s323 + $0x3c] sm:$0xf]
        %v340 = vld [vmem:[%s323 + $0x40] sm:$0xf]
        %v341 = vld [vmem:[%s323 + $0x44] sm:$0xf]
        %v342 = vld [vmem:[%s323 + $0x48] sm:$0xf]
        %v343 = vld [vmem:[%s323 + $0x4c] sm:$0xf]
        %v346 = vunpack.c.l.b16 %v321
        %v347 = vunpack.c.h.b16 %v321
        %v348 = vunpack.c.l.b16 %v322
        %v349 = vunpack.c.h.b16 %v322
        %v350 = vpack.c.b16 %v348, %v346
        %v351 = vpack.c.b16 %v349, %v347
        %v353 = vshrl.u32 %v350, 16
        %v355 = vshll.u32 %v350, 16
        %v357 = vrot.slane %v355, 1
        %v358 = vor.u32 %v353, %v357
        %v360 = vshrl.u32 %v351, 16
        %v362 = vshll.u32 %v351, 16
        %v364 = vrot.slane %v362, 1
        %v365 = vor.u32 %v360, %v364
        %v387 = vunpack.c.l.b16 %v324
        %v388 = vunpack.c.l.b16 %v325
        %v389 = vunpack.c.l.b16 %v326
        %v390 = vunpack.c.l.b16 %v327
        %v391 = vunpack.c.l.b16 %v328
        %v392 = vunpack.c.l.b16 %v329
        %v393 = vunpack.c.l.b16 %v330
        %v394 = vunpack.c.l.b16 %v331
        %v395 = vunpack.c.l.b16 %v332
        %v396 = vunpack.c.l.b16 %v333
        %v397 = vunpack.c.l.b16 %v334
        %v398 = vunpack.c.l.b16 %v335
        %v399 = vunpack.c.l.b16 %v336
        %v400 = vunpack.c.l.b16 %v337
        %v401 = vunpack.c.l.b16 %v338
        %v402 = vunpack.c.l.b16 %v339
        %v403 = vunpack.c.l.b16 %v340
        %v404 = vunpack.c.l.b16 %v341
        %v405 = vunpack.c.l.b16 %v342
        %v406 = vunpack.c.l.b16 %v343
        %v407 = vpack.c.b16 %v388, %v387
        %v408 = vpack.c.b16 %v390, %v389
        %v409 = vpack.c.b16 %v392, %v391
        %v410 = vpack.c.b16 %v394, %v393
        %v411 = vpack.c.b16 %v396, %v395
        %v412 = vpack.c.b16 %v398, %v397
        %v413 = vpack.c.b16 %v400, %v399
        %v414 = vpack.c.b16 %v402, %v401
        %v415 = vpack.c.b16 %v404, %v403
        %v416 = vpack.c.b16 %v406, %v405
        %v428 = vsel %vm274, %v365, 0
        %430 = vmatprep.subr.bf16.mxu0 0
        %431 = vmatpush1.bf16.msra.mxu0 %v407
        %432 = vmatprep.subr.bf16.mxu0 0
        %433 = vmatpush1.bf16.msra.mxu0 %v408
        %434 = vmatprep.subr.bf16.mxu0 0
        %435 = vmatpush1.bf16.msra.mxu0 %v409
        %436 = vmatprep.subr.bf16.mxu0 0
        %437 = vmatpush1.bf16.msra.mxu0 %v410
        %438 = vmatprep.subr.bf16.mxu0 0
        %439 = vmatpush1.bf16.msra.mxu0 %v411
        %440 = vmatprep.subr.bf16.mxu0 0
        %441 = vmatpush1.bf16.msra.mxu0 %v412
        %442 = vmatprep.subr.bf16.mxu0 0
        %443 = vmatpush1.bf16.msra.mxu0 %v413
        %444 = vmatprep.subr.bf16.mxu0 0
        %445 = vmatpush1.bf16.msra.mxu0 %v414
        %446 = vmatprep.subr.bf16.mxu0 0
        %447 = vmatpush1.bf16.msra.mxu0 %v415
        %448 = vmatprep.subr.bf16.mxu0 0
        %449 = vmatpush1.bf16.msra.mxu0 %v416
        %450 = vmatprep.subr.bf16.mxu0 0
        %451 = vmatpush1.bf16.msra.mxu0 0
        %452 = vmatprep.subr.bf16.mxu0 0
        %453 = vmatpush1.bf16.msra.mxu0 0
        %454 = vmatprep.subr.bf16.mxu0 0
        %455 = vmatpush1.bf16.msra.mxu0 0
        %456 = vmatprep.subr.bf16.mxu0 0
        %457 = vmatpush1.bf16.msra.mxu0 0
        %458 = vmatprep.subr.bf16.mxu0 0
        %459 = vmatpush1.bf16.msra.mxu0 0
        %460 = vmatprep.subr.bf16.mxu0 0
        %461 = vmatpush1.bf16.msra.mxu0 0
        %462 = vmatprep.mubr.bf16.mxu0 %v428
        %463 = vmatmul.mubr.bf16.gmra.mrb[0].mxu0 %v358
        %v464 = vpop.f32.mrb[0].mxu0
        %v465 = vadd.f32 0.0, %v464
        %v466 = vpop.f32.mrb[0].mxu0
        %v467 = vpop.f32.mrb[0].mxu0
        %v468 = vpop.f32.mrb[0].mxu0
        %469 = vdwg.mxu0
        %v470 = vadd.f32 %v320, %v465
        %471 = vst [vmem:[#allocation2] sm:$0xff] %v470
        %v472 = vld [vmem:[#allocation2] sm:$0xff]
        %v473 = vld [vmem:[%s183] sm:$0xee]
        %v474 = vld [vmem:[%s183 + $0x8] sm:$0x11]
        %s475 = scalar_lea.vmem [#allocation3], 160
        %v476 = vld [vmem:[%s475] sm:$0xf]
        %v477 = vld [vmem:[%s475 + $0x4] sm:$0xf]
        %v478 = vld [vmem:[%s475 + $0x8] sm:$0xf]
        %v479 = vld [vmem:[%s475 + $0xc] sm:$0xf]
        %v480 = vld [vmem:[%s475 + $0x10] sm:$0xf]
        %v481 = vld [vmem:[%s475 + $0x14] sm:$0xf]
        %v482 = vld [vmem:[%s475 + $0x18] sm:$0xf]
        %v483 = vld [vmem:[%s475 + $0x1c] sm:$0xf]
        %v484 = vld [vmem:[%s475 + $0x20] sm:$0xf]
        %v485 = vld [vmem:[%s475 + $0x24] sm:$0xf]
        %v486 = vld [vmem:[%s475 + $0x28] sm:$0xf]
        %v487 = vld [vmem:[%s475 + $0x2c] sm:$0xf]
        %v488 = vld [vmem:[%s475 + $0x30] sm:$0xf]
        %v489 = vld [vmem:[%s475 + $0x34] sm:$0xf]
        %v490 = vld [vmem:[%s475 + $0x38] sm:$0xf]
        %v491 = vld [vmem:[%s475 + $0x3c] sm:$0xf]
        %v492 = vld [vmem:[%s475 + $0x40] sm:$0xf]
        %v493 = vld [vmem:[%s475 + $0x44] sm:$0xf]
        %v494 = vld [vmem:[%s475 + $0x48] sm:$0xf]
        %v495 = vld [vmem:[%s475 + $0x4c] sm:$0xf]
        %v498 = vunpack.c.l.b16 %v473
        %v499 = vunpack.c.h.b16 %v473
        %v500 = vunpack.c.l.b16 %v474
        %v501 = vunpack.c.h.b16 %v474
        %v502 = vpack.c.b16 %v500, %v498
        %v503 = vpack.c.b16 %v501, %v499
        %v504 = vrot.slane %v502, 1
        %v505 = vrot.slane %v503, 1
        %v527 = vunpack.c.l.b16 %v476
        %v528 = vunpack.c.l.b16 %v477
        %v529 = vunpack.c.l.b16 %v478
        %v530 = vunpack.c.l.b16 %v479
        %v531 = vunpack.c.l.b16 %v480
        %v532 = vunpack.c.l.b16 %v481
        %v533 = vunpack.c.l.b16 %v482
        %v534 = vunpack.c.l.b16 %v483
        %v535 = vunpack.c.l.b16 %v484
        %v536 = vunpack.c.l.b16 %v485
        %v537 = vunpack.c.l.b16 %v486
        %v538 = vunpack.c.l.b16 %v487
        %v539 = vunpack.c.l.b16 %v488
        %v540 = vunpack.c.l.b16 %v489
        %v541 = vunpack.c.l.b16 %v490
        %v542 = vunpack.c.l.b16 %v491
        %v543 = vunpack.c.l.b16 %v492
        %v544 = vunpack.c.l.b16 %v493
        %v545 = vunpack.c.l.b16 %v494
        %v546 = vunpack.c.l.b16 %v495
        %v547 = vpack.c.b16 %v528, %v527
        %v548 = vpack.c.b16 %v530, %v529
        %v549 = vpack.c.b16 %v532, %v531
        %v550 = vpack.c.b16 %v534, %v533
        %v551 = vpack.c.b16 %v536, %v535
        %v552 = vpack.c.b16 %v538, %v537
        %v553 = vpack.c.b16 %v540, %v539
        %v554 = vpack.c.b16 %v542, %v541
        %v555 = vpack.c.b16 %v544, %v543
        %v556 = vpack.c.b16 %v546, %v545
        %v568 = vsel %vm274, %v505, 0
        %570 = vmatprep.subr.bf16.mxu0 0
        %571 = vmatpush1.bf16.msra.mxu0 %v547
        %572 = vmatprep.subr.bf16.mxu0 0
        %573 = vmatpush1.bf16.msra.mxu0 %v548
        %574 = vmatprep.subr.bf16.mxu0 0
        %575 = vmatpush1.bf16.msra.mxu0 %v549
        %576 = vmatprep.subr.bf16.mxu0 0
        %577 = vmatpush1.bf16.msra.mxu0 %v550
        %578 = vmatprep.subr.bf16.mxu0 0
        %579 = vmatpush1.bf16.msra.mxu0 %v551
        %580 = vmatprep.subr.bf16.mxu0 0
        %581 = vmatpush1.bf16.msra.mxu0 %v552
        %582 = vmatprep.subr.bf16.mxu0 0
        %583 = vmatpush1.bf16.msra.mxu0 %v553
        %584 = vmatprep.subr.bf16.mxu0 0
        %585 = vmatpush1.bf16.msra.mxu0 %v554
        %586 = vmatprep.subr.bf16.mxu0 0
        %587 = vmatpush1.bf16.msra.mxu0 %v555
        %588 = vmatprep.subr.bf16.mxu0 0
        %589 = vmatpush1.bf16.msra.mxu0 %v556
        %590 = vmatprep.subr.bf16.mxu0 0
        %591 = vmatpush1.bf16.msra.mxu0 0
        %592 = vmatprep.subr.bf16.mxu0 0
        %593 = vmatpush1.bf16.msra.mxu0 0
        %594 = vmatprep.subr.bf16.mxu0 0
        %595 = vmatpush1.bf16.msra.mxu0 0
        %596 = vmatprep.subr.bf16.mxu0 0
        %597 = vmatpush1.bf16.msra.mxu0 0
        %598 = vmatprep.subr.bf16.mxu0 0
        %599 = vmatpush1.bf16.msra.mxu0 0
        %600 = vmatprep.subr.bf16.mxu0 0
        %601 = vmatpush1.bf16.msra.mxu0 0
        %602 = vmatprep.mubr.bf16.mxu0 %v568
        %603 = vmatmul.mubr.bf16.gmra.mrb[0].mxu0 %v504
        %v604 = vpop.f32.mrb[0].mxu0
        %v605 = vadd.f32 0.0, %v604
        %v606 = vpop.f32.mrb[0].mxu0
        %v607 = vpop.f32.mrb[0].mxu0
        %v608 = vpop.f32.mrb[0].mxu0
        %609 = vdwg.mxu0
        %v610 = vadd.f32 %v472, %v605
        %611 = vst [vmem:[#allocation2] sm:$0xff] %v610
        %v612 = vld [vmem:[#allocation2] sm:$0xff]
        %v613 = vld [vmem:[%s183] sm:$0xcc]
        %v614 = vld [vmem:[%s183 + $0x8] sm:$0x33]
        %s615 = scalar_lea.vmem [#allocation3], 240
        %v616 = vld [vmem:[%s615] sm:$0xf]
        %v617 = vld [vmem:[%s615 + $0x4] sm:$0xf]
        %v618 = vld [vmem:[%s615 + $0x8] sm:$0xf]
        %v619 = vld [vmem:[%s615 + $0xc] sm:$0xf]
        %v620 = vld [vmem:[%s615 + $0x10] sm:$0xf]
        %v621 = vld [vmem:[%s615 + $0x14] sm:$0xf]
        %v622 = vld [vmem:[%s615 + $0x18] sm:$0xf]
        %v623 = vld [vmem:[%s615 + $0x1c] sm:$0xf]
        %v624 = vld [vmem:[%s615 + $0x20] sm:$0xf]
        %v625 = vld [vmem:[%s615 + $0x24] sm:$0xf]
        %v626 = vld [vmem:[%s615 + $0x28] sm:$0xf]
        %v627 = vld [vmem:[%s615 + $0x2c] sm:$0xf]
        %v628 = vld [vmem:[%s615 + $0x30] sm:$0xf]
        %v629 = vld [vmem:[%s615 + $0x34] sm:$0xf]
        %v630 = vld [vmem:[%s615 + $0x38] sm:$0xf]
        %v631 = vld [vmem:[%s615 + $0x3c] sm:$0xf]
        %v632 = vld [vmem:[%s615 + $0x40] sm:$0xf]
        %v633 = vld [vmem:[%s615 + $0x44] sm:$0xf]
        %v634 = vld [vmem:[%s615 + $0x48] sm:$0xf]
        %v635 = vld [vmem:[%s615 + $0x4c] sm:$0xf]
        %v638 = vunpack.c.l.b16 %v613
        %v639 = vunpack.c.h.b16 %v613
        %v640 = vunpack.c.l.b16 %v614
        %v641 = vunpack.c.h.b16 %v614
        %v642 = vpack.c.b16 %v640, %v638
        %v643 = vpack.c.b16 %v641, %v639
        %v644 = vrot.slane %v642, 2
        %v645 = vrot.slane %v643, 2
        %v667 = vunpack.c.l.b16 %v616
        %v668 = vunpack.c.l.b16 %v617
        %v669 = vunpack.c.l.b16 %v618
        %v670 = vunpack.c.l.b16 %v619
        %v671 = vunpack.c.l.b16 %v620
        %v672 = vunpack.c.l.b16 %v621
        %v673 = vunpack.c.l.b16 %v622
        %v674 = vunpack.c.l.b16 %v623
        %v675 = vunpack.c.l.b16 %v624
        %v676 = vunpack.c.l.b16 %v625
        %v677 = vunpack.c.l.b16 %v626
        %v678 = vunpack.c.l.b16 %v627
        %v679 = vunpack.c.l.b16 %v628
        %v680 = vunpack.c.l.b16 %v629
        %v681 = vunpack.c.l.b16 %v630
        %v682 = vunpack.c.l.b16 %v631
        %v683 = vunpack.c.l.b16 %v632
        %v684 = vunpack.c.l.b16 %v633
        %v685 = vunpack.c.l.b16 %v634
        %v686 = vunpack.c.l.b16 %v635
        %v687 = vpack.c.b16 %v668, %v667
        %v688 = vpack.c.b16 %v670, %v669
        %v689 = vpack.c.b16 %v672, %v671
        %v690 = vpack.c.b16 %v674, %v673
        %v691 = vpack.c.b16 %v676, %v675
        %v692 = vpack.c.b16 %v678, %v677
        %v693 = vpack.c.b16 %v680, %v679
        %v694 = vpack.c.b16 %v682, %v681
        %v695 = vpack.c.b16 %v684, %v683
        %v696 = vpack.c.b16 %v686, %v685
        %v708 = vsel %vm274, %v645, 0
        %710 = vmatprep.subr.bf16.mxu0 0
        %711 = vmatpush1.bf16.msra.mxu0 %v687
        %712 = vmatprep.subr.bf16.mxu0 0
        %713 = vmatpush1.bf16.msra.mxu0 %v688
        %714 = vmatprep.subr.bf16.mxu0 0
        %715 = vmatpush1.bf16.msra.mxu0 %v689
        %716 = vmatprep.subr.bf16.mxu0 0
        %717 = vmatpush1.bf16.msra.mxu0 %v690
        %718 = vmatprep.subr.bf16.mxu0 0
        %719 = vmatpush1.bf16.msra.mxu0 %v691
        %720 = vmatprep.subr.bf16.mxu0 0
        %721 = vmatpush1.bf16.msra.mxu0 %v692
        %722 = vmatprep.subr.bf16.mxu0 0
        %723 = vmatpush1.bf16.msra.mxu0 %v693
        %724 = vmatprep.subr.bf16.mxu0 0
        %725 = vmatpush1.bf16.msra.mxu0 %v694
        %726 = vmatprep.subr.bf16.mxu0 0
        %727 = vmatpush1.bf16.msra.mxu0 %v695
        %728 = vmatprep.subr.bf16.mxu0 0
        %729 = vmatpush1.bf16.msra.mxu0 %v696
        %730 = vmatprep.subr.bf16.mxu0 0
        %731 = vmatpush1.bf16.msra.mxu0 0
        %732 = vmatprep.subr.bf16.mxu0 0
        %733 = vmatpush1.bf16.msra.mxu0 0
        %734 = vmatprep.subr.bf16.mxu0 0
        %735 = vmatpush1.bf16.msra.mxu0 0
        %736 = vmatprep.subr.bf16.mxu0 0
        %737 = vmatpush1.bf16.msra.mxu0 0
        %738 = vmatprep.subr.bf16.mxu0 0
        %739 = vmatpush1.bf16.msra.mxu0 0
        %740 = vmatprep.subr.bf16.mxu0 0
        %741 = vmatpush1.bf16.msra.mxu0 0
        %742 = vmatprep.mubr.bf16.mxu0 %v708
        %743 = vmatmul.mubr.bf16.gmra.mrb[0].mxu0 %v644
        %v744 = vpop.f32.mrb[0].mxu0
        %v745 = vadd.f32 0.0, %v744
        %v746 = vpop.f32.mrb[0].mxu0
        %v747 = vpop.f32.mrb[0].mxu0
        %v748 = vpop.f32.mrb[0].mxu0
        %749 = vdwg.mxu0
        %v750 = vadd.f32 %v612, %v745
        %751 = vst [vmem:[#allocation2] sm:$0xff] %v750
        %v752 = vld [vmem:[#allocation2] sm:$0xff]
        %v753 = vld [vmem:[%s183] sm:$0xcc]
        %v754 = vld [vmem:[%s183 + $0x8] sm:$0x77]
        %s755 = scalar_lea.vmem [#allocation3], 320
        %v756 = vld [vmem:[%s755] sm:$0xf]
        %v757 = vld [vmem:[%s755 + $0x4] sm:$0xf]
        %v758 = vld [vmem:[%s755 + $0x8] sm:$0xf]
        %v759 = vld [vmem:[%s755 + $0xc] sm:$0xf]
        %v760 = vld [vmem:[%s755 + $0x10] sm:$0xf]
        %v761 = vld [vmem:[%s755 + $0x14] sm:$0xf]
        %v762 = vld [vmem:[%s755 + $0x18] sm:$0xf]
        %v763 = vld [vmem:[%s755 + $0x1c] sm:$0xf]
        %v764 = vld [vmem:[%s755 + $0x20] sm:$0xf]
        %v765 = vld [vmem:[%s755 + $0x24] sm:$0xf]
        %v766 = vld [vmem:[%s755 + $0x28] sm:$0xf]
        %v767 = vld [vmem:[%s755 + $0x2c] sm:$0xf]
        %v768 = vld [vmem:[%s755 + $0x30] sm:$0xf]
        %v769 = vld [vmem:[%s755 + $0x34] sm:$0xf]
        %v770 = vld [vmem:[%s755 + $0x38] sm:$0xf]
        %v771 = vld [vmem:[%s755 + $0x3c] sm:$0xf]
        %v772 = vld [vmem:[%s755 + $0x40] sm:$0xf]
        %v773 = vld [vmem:[%s755 + $0x44] sm:$0xf]
        %v774 = vld [vmem:[%s755 + $0x48] sm:$0xf]
        %v775 = vld [vmem:[%s755 + $0x4c] sm:$0xf]
        %v778 = vunpack.c.l.b16 %v753
        %v779 = vunpack.c.h.b16 %v753
        %v780 = vunpack.c.l.b16 %v754
        %v781 = vunpack.c.h.b16 %v754
        %v782 = vpack.c.b16 %v780, %v778
        %v783 = vpack.c.b16 %v781, %v779
        %v785 = vshrl.u32 %v782, 16
        %v787 = vrot.slane %v785, 2
        %v788 = vshll.u32 %v782, 16
        %v790 = vrot.slane %v788, 3
        %v791 = vor.u32 %v787, %v790
        %v793 = vshrl.u32 %v783, 16
        %v795 = vrot.slane %v793, 2
        %v796 = vshll.u32 %v783, 16
        %v798 = vrot.slane %v796, 3
        %v799 = vor.u32 %v795, %v798
        %v821 = vunpack.c.l.b16 %v756
        %v822 = vunpack.c.l.b16 %v757
        %v823 = vunpack.c.l.b16 %v758
        %v824 = vunpack.c.l.b16 %v759
        %v825 = vunpack.c.l.b16 %v760
        %v826 = vunpack.c.l.b16 %v761
        %v827 = vunpack.c.l.b16 %v762
        %v828 = vunpack.c.l.b16 %v763
        %v829 = vunpack.c.l.b16 %v764
        %v830 = vunpack.c.l.b16 %v765
        %v831 = vunpack.c.l.b16 %v766
        %v832 = vunpack.c.l.b16 %v767
        %v833 = vunpack.c.l.b16 %v768
        %v834 = vunpack.c.l.b16 %v769
        %v835 = vunpack.c.l.b16 %v770
        %v836 = vunpack.c.l.b16 %v771
        %v837 = vunpack.c.l.b16 %v772
        %v838 = vunpack.c.l.b16 %v773
        %v839 = vunpack.c.l.b16 %v774
        %v840 = vunpack.c.l.b16 %v775
        %v841 = vpack.c.b16 %v822, %v821
        %v842 = vpack.c.b16 %v824, %v823
        %v843 = vpack.c.b16 %v826, %v825
        %v844 = vpack.c.b16 %v828, %v827
        %v845 = vpack.c.b16 %v830, %v829
        %v846 = vpack.c.b16 %v832, %v831
        %v847 = vpack.c.b16 %v834, %v833
        %v848 = vpack.c.b16 %v836, %v835
        %v849 = vpack.c.b16 %v838, %v837
        %v850 = vpack.c.b16 %v840, %v839
        %v862 = vsel %vm274, %v799, 0
        %864 = vmatprep.subr.bf16.mxu0 0
        %865 = vmatpush1.bf16.msra.mxu0 %v841
        %866 = vmatprep.subr.bf16.mxu0 0
        %867 = vmatpush1.bf16.msra.mxu0 %v842
        %868 = vmatprep.subr.bf16.mxu0 0
        %869 = vmatpush1.bf16.msra.mxu0 %v843
        %870 = vmatprep.subr.bf16.mxu0 0
        %871 = vmatpush1.bf16.msra.mxu0 %v844
        %872 = vmatprep.subr.bf16.mxu0 0
        %873 = vmatpush1.bf16.msra.mxu0 %v845
        %874 = vmatprep.subr.bf16.mxu0 0
        %875 = vmatpush1.bf16.msra.mxu0 %v846
        %876 = vmatprep.subr.bf16.mxu0 0
        %877 = vmatpush1.bf16.msra.mxu0 %v847
        %878 = vmatprep.subr.bf16.mxu0 0
        %879 = vmatpush1.bf16.msra.mxu0 %v848
        %880 = vmatprep.subr.bf16.mxu0 0
        %881 = vmatpush1.bf16.msra.mxu0 %v849
        %882 = vmatprep.subr.bf16.mxu0 0
        %883 = vmatpush1.bf16.msra.mxu0 %v850
        %884 = vmatprep.subr.bf16.mxu0 0
        %885 = vmatpush1.bf16.msra.mxu0 0
        %886 = vmatprep.subr.bf16.mxu0 0
        %887 = vmatpush1.bf16.msra.mxu0 0
        %888 = vmatprep.subr.bf16.mxu0 0
        %889 = vmatpush1.bf16.msra.mxu0 0
        %890 = vmatprep.subr.bf16.mxu0 0
        %891 = vmatpush1.bf16.msra.mxu0 0
        %892 = vmatprep.subr.bf16.mxu0 0
        %893 = vmatpush1.bf16.msra.mxu0 0
        %894 = vmatprep.subr.bf16.mxu0 0
        %895 = vmatpush1.bf16.msra.mxu0 0
        %896 = vmatprep.mubr.bf16.mxu0 %v862
        %897 = vmatmul.mubr.bf16.gmra.mrb[0].mxu0 %v791
        %v898 = vpop.f32.mrb[0].mxu0
        %v899 = vadd.f32 0.0, %v898
        %v900 = vpop.f32.mrb[0].mxu0
        %v901 = vpop.f32.mrb[0].mxu0
        %v902 = vpop.f32.mrb[0].mxu0
        %903 = vdwg.mxu0
        %v904 = vadd.f32 %v752, %v899
        %905 = vst [vmem:[#allocation2] sm:$0xff] %v904
        %v906 = vld [vmem:[#allocation2] sm:$0xff]
        %v907 = vld [vmem:[%s183] sm:$0x88]
        %v908 = vld [vmem:[%s183 + $0x8] sm:$0x77]
        %s909 = scalar_lea.vmem [#allocation3], 400
        %v910 = vld [vmem:[%s909] sm:$0xf]
        %v911 = vld [vmem:[%s909 + $0x4] sm:$0xf]
        %v912 = vld [vmem:[%s909 + $0x8] sm:$0xf]
        %v913 = vld [vmem:[%s909 + $0xc] sm:$0xf]
        %v914 = vld [vmem:[%s909 + $0x10] sm:$0xf]
        %v915 = vld [vmem:[%s909 + $0x14] sm:$0xf]
        %v916 = vld [vmem:[%s909 + $0x18] sm:$0xf]
        %v917 = vld [vmem:[%s909 + $0x1c] sm:$0xf]
        %v918 = vld [vmem:[%s909 + $0x20] sm:$0xf]
        %v919 = vld [vmem:[%s909 + $0x24] sm:$0xf]
        %v920 = vld [vmem:[%s909 + $0x28] sm:$0xf]
        %v921 = vld [vmem:[%s909 + $0x2c] sm:$0xf]
        %v922 = vld [vmem:[%s909 + $0x30] sm:$0xf]
        %v923 = vld [vmem:[%s909 + $0x34] sm:$0xf]
        %v924 = vld [vmem:[%s909 + $0x38] sm:$0xf]
        %v925 = vld [vmem:[%s909 + $0x3c] sm:$0xf]
        %v926 = vld [vmem:[%s909 + $0x40] sm:$0xf]
        %v927 = vld [vmem:[%s909 + $0x44] sm:$0xf]
        %v928 = vld [vmem:[%s909 + $0x48] sm:$0xf]
        %v929 = vld [vmem:[%s909 + $0x4c] sm:$0xf]
        %v932 = vunpack.c.l.b16 %v907
        %v933 = vunpack.c.h.b16 %v907
        %v934 = vunpack.c.l.b16 %v908
        %v935 = vunpack.c.h.b16 %v908
        %v936 = vpack.c.b16 %v934, %v932
        %v937 = vpack.c.b16 %v935, %v933
        %v938 = vrot.slane %v936, 3
        %v939 = vrot.slane %v937, 3
        %v961 = vunpack.c.l.b16 %v910
        %v962 = vunpack.c.l.b16 %v911
        %v963 = vunpack.c.l.b16 %v912
        %v964 = vunpack.c.l.b16 %v913
        %v965 = vunpack.c.l.b16 %v914
        %v966 = vunpack.c.l.b16 %v915
        %v967 = vunpack.c.l.b16 %v916
        %v968 = vunpack.c.l.b16 %v917
        %v969 = vunpack.c.l.b16 %v918
        %v970 = vunpack.c.l.b16 %v919
        %v971 = vunpack.c.l.b16 %v920
        %v972 = vunpack.c.l.b16 %v921
        %v973 = vunpack.c.l.b16 %v922
        %v974 = vunpack.c.l.b16 %v923
        %v975 = vunpack.c.l.b16 %v924
        %v976 = vunpack.c.l.b16 %v925
        %v977 = vunpack.c.l.b16 %v926
        %v978 = vunpack.c.l.b16 %v927
        %v979 = vunpack.c.l.b16 %v928
        %v980 = vunpack.c.l.b16 %v929
        %v981 = vpack.c.b16 %v962, %v961
        %v982 = vpack.c.b16 %v964, %v963
        %v983 = vpack.c.b16 %v966, %v965
        %v984 = vpack.c.b16 %v968, %v967
        %v985 = vpack.c.b16 %v970, %v969
        %v986 = vpack.c.b16 %v972, %v971
        %v987 = vpack.c.b16 %v974, %v973
        %v988 = vpack.c.b16 %v976, %v975
        %v989 = vpack.c.b16 %v978, %v977
        %v990 = vpack.c.b16 %v980, %v979
        %v1002 = vsel %vm274, %v939, 0
        %1004 = vmatprep.subr.bf16.mxu0 0
        %1005 = vmatpush1.bf16.msra.mxu0 %v981
        %1006 = vmatprep.subr.bf16.mxu0 0
        %1007 = vmatpush1.bf16.msra.mxu0 %v982
        %1008 = vmatprep.subr.bf16.mxu0 0
        %1009 = vmatpush1.bf16.msra.mxu0 %v983
        %1010 = vmatprep.subr.bf16.mxu0 0
        %1011 = vmatpush1.bf16.msra.mxu0 %v984
        %1012 = vmatprep.subr.bf16.mxu0 0
        %1013 = vmatpush1.bf16.msra.mxu0 %v985
        %1014 = vmatprep.subr.bf16.mxu0 0
        %1015 = vmatpush1.bf16.msra.mxu0 %v986
        %1016 = vmatprep.subr.bf16.mxu0 0
        %1017 = vmatpush1.bf16.msra.mxu0 %v987
        %1018 = vmatprep.subr.bf16.mxu0 0
        %1019 = vmatpush1.bf16.msra.mxu0 %v988
        %1020 = vmatprep.subr.bf16.mxu0 0
        %1021 = vmatpush1.bf16.msra.mxu0 %v989
        %1022 = vmatprep.subr.bf16.mxu0 0
        %1023 = vmatpush1.bf16.msra.mxu0 %v990
        %1024 = vmatprep.subr.bf16.mxu0 0
        %1025 = vmatpush1.bf16.msra.mxu0 0
        %1026 = vmatprep.subr.bf16.mxu0 0
        %1027 = vmatpush1.bf16.msra.mxu0 0
        %1028 = vmatprep.subr.bf16.mxu0 0
        %1029 = vmatpush1.bf16.msra.mxu0 0
        %1030 = vmatprep.subr.bf16.mxu0 0
        %1031 = vmatpush1.bf16.msra.mxu0 0
        %1032 = vmatprep.subr.bf16.mxu0 0
        %1033 = vmatpush1.bf16.msra.mxu0 0
        %1034 = vmatprep.subr.bf16.mxu0 0
        %1035 = vmatpush1.bf16.msra.mxu0 0
        %1036 = vmatprep.mubr.bf16.mxu0 %v1002
        %1037 = vmatmul.mubr.bf16.gmra.mrb[0].mxu0 %v938
        %v1038 = vpop.f32.mrb[0].mxu0
        %v1039 = vadd.f32 0.0, %v1038
        %v1040 = vpop.f32.mrb[0].mxu0
        %v1041 = vpop.f32.mrb[0].mxu0
        %v1042 = vpop.f32.mrb[0].mxu0
        %1043 = vdwg.mxu0
        %v1044 = vadd.f32 %v906, %v1039
        %1045 = vst [vmem:[#allocation2] sm:$0xff] %v1044
        %v1046 = vld [vmem:[#allocation2] sm:$0xff]
        %v1047 = vld [vmem:[%s183 + $0x8] sm:$0xff]
        %s1048 = scalar_lea.vmem [#allocation3], 480
        %v1049 = vld [vmem:[%s1048] sm:$0xf]
        %v1050 = vld [vmem:[%s1048 + $0x4] sm:$0xf]
        %v1051 = vld [vmem:[%s1048 + $0x8] sm:$0xf]
        %v1052 = vld [vmem:[%s1048 + $0xc] sm:$0xf]
        %v1053 = vld [vmem:[%s1048 + $0x10] sm:$0xf]
        %v1054 = vld [vmem:[%s1048 + $0x14] sm:$0xf]
        %v1055 = vld [vmem:[%s1048 + $0x18] sm:$0xf]
        %v1056 = vld [vmem:[%s1048 + $0x1c] sm:$0xf]
        %v1057 = vld [vmem:[%s1048 + $0x20] sm:$0xf]
        %v1058 = vld [vmem:[%s1048 + $0x24] sm:$0xf]
        %v1059 = vld [vmem:[%s1048 + $0x28] sm:$0xf]
        %v1060 = vld [vmem:[%s1048 + $0x2c] sm:$0xf]
        %v1061 = vld [vmem:[%s1048 + $0x30] sm:$0xf]
        %v1062 = vld [vmem:[%s1048 + $0x34] sm:$0xf]
        %v1063 = vld [vmem:[%s1048 + $0x38] sm:$0xf]
        %v1064 = vld [vmem:[%s1048 + $0x3c] sm:$0xf]
        %v1065 = vld [vmem:[%s1048 + $0x40] sm:$0xf]
        %v1066 = vld [vmem:[%s1048 + $0x44] sm:$0xf]
        %v1067 = vld [vmem:[%s1048 + $0x48] sm:$0xf]
        %v1068 = vld [vmem:[%s1048 + $0x4c] sm:$0xf]
        %v1070 = vunpack.c.l.b16 %v1047
        %v1071 = vunpack.c.h.b16 %v1047
        %v1072 = vpack.c.b16 %v1070, %v1070
        %v1073 = vpack.c.b16 %v1071, %v1071
        %v1095 = vunpack.c.l.b16 %v1049
        %v1096 = vunpack.c.l.b16 %v1050
        %v1097 = vunpack.c.l.b16 %v1051
        %v1098 = vunpack.c.l.b16 %v1052
        %v1099 = vunpack.c.l.b16 %v1053
        %v1100 = vunpack.c.l.b16 %v1054
        %v1101 = vunpack.c.l.b16 %v1055
        %v1102 = vunpack.c.l.b16 %v1056
        %v1103 = vunpack.c.l.b16 %v1057
        %v1104 = vunpack.c.l.b16 %v1058
        %v1105 = vunpack.c.l.b16 %v1059
        %v1106 = vunpack.c.l.b16 %v1060
        %v1107 = vunpack.c.l.b16 %v1061
        %v1108 = vunpack.c.l.b16 %v1062
        %v1109 = vunpack.c.l.b16 %v1063
        %v1110 = vunpack.c.l.b16 %v1064
        %v1111 = vunpack.c.l.b16 %v1065
        %v1112 = vunpack.c.l.b16 %v1066
        %v1113 = vunpack.c.l.b16 %v1067
        %v1114 = vunpack.c.l.b16 %v1068
        %v1115 = vpack.c.b16 %v1096, %v1095
        %v1116 = vpack.c.b16 %v1098, %v1097
        %v1117 = vpack.c.b16 %v1100, %v1099
        %v1118 = vpack.c.b16 %v1102, %v1101
        %v1119 = vpack.c.b16 %v1104, %v1103
        %v1120 = vpack.c.b16 %v1106, %v1105
        %v1121 = vpack.c.b16 %v1108, %v1107
        %v1122 = vpack.c.b16 %v1110, %v1109
        %v1123 = vpack.c.b16 %v1112, %v1111
        %v1124 = vpack.c.b16 %v1114, %v1113
        %v1136 = vsel %vm274, %v1073, 0
        %1138 = vmatprep.subr.bf16.mxu0 0
        %1139 = vmatpush1.bf16.msra.mxu0 %v1115
        %1140 = vmatprep.subr.bf16.mxu0 0
        %1141 = vmatpush1.bf16.msra.mxu0 %v1116
        %1142 = vmatprep.subr.bf16.mxu0 0
        %1143 = vmatpush1.bf16.msra.mxu0 %v1117
        %1144 = vmatprep.subr.bf16.mxu0 0
        %1145 = vmatpush1.bf16.msra.mxu0 %v1118
        %1146 = vmatprep.subr.bf16.mxu0 0
        %1147 = vmatpush1.bf16.msra.mxu0 %v1119
        %1148 = vmatprep.subr.bf16.mxu0 0
        %1149 = vmatpush1.bf16.msra.mxu0 %v1120
        %1150 = vmatprep.subr.bf16.mxu0 0
        %1151 = vmatpush1.bf16.msra.mxu0 %v1121
        %1152 = vmatprep.subr.bf16.mxu0 0
        %1153 = vmatpush1.bf16.msra.mxu0 %v1122
        %1154 = vmatprep.subr.bf16.mxu0 0
        %1155 = vmatpush1.bf16.msra.mxu0 %v1123
        %1156 = vmatprep.subr.bf16.mxu0 0
        %1157 = vmatpush1.bf16.msra.mxu0 %v1124
        %1158 = vmatprep.subr.bf16.mxu0 0
        %1159 = vmatpush1.bf16.msra.mxu0 0
        %1160 = vmatprep.subr.bf16.mxu0 0
        %1161 = vmatpush1.bf16.msra.mxu0 0
        %1162 = vmatprep.subr.bf16.mxu0 0
        %1163 = vmatpush1.bf16.msra.mxu0 0
        %1164 = vmatprep.subr.bf16.mxu0 0
        %1165 = vmatpush1.bf16.msra.mxu0 0
        %1166 = vmatprep.subr.bf16.mxu0 0
        %1167 = vmatpush1.bf16.msra.mxu0 0
        %1168 = vmatprep.subr.bf16.mxu0 0
        %1169 = vmatpush1.bf16.msra.mxu0 0
        %1170 = vmatprep.mubr.bf16.mxu0 %v1136
        %1171 = vmatmul.mubr.bf16.gmra.mrb[0].mxu0 %v1072
        %v1172 = vpop.f32.mrb[0].mxu0
        %v1173 = vadd.f32 0.0, %v1172
        %v1174 = vpop.f32.mrb[0].mxu0
        %v1175 = vpop.f32.mrb[0].mxu0
        %v1176 = vpop.f32.mrb[0].mxu0
        %1177 = vdwg.mxu0
        %v1178 = vadd.f32 %v1046, %v1173
        %1179 = vst [vmem:[#allocation2] sm:$0xff] %v1178
        %v1180 = vld [vmem:[#allocation2] sm:$0xff]
        %v1181 = vld [vmem:[%s183 + $0x8] sm:$0xff]
        %v1182 = vld [vmem:[%s183 + $0x10] sm:$0x11]
        %s1183 = scalar_lea.vmem [#allocation3], 560
        %v1184 = vld [vmem:[%s1183] sm:$0xf]
        %v1185 = vld [vmem:[%s1183 + $0x4] sm:$0xf]
        %v1186 = vld [vmem:[%s1183 + $0x8] sm:$0xf]
        %v1187 = vld [vmem:[%s1183 + $0xc] sm:$0xf]
        %v1188 = vld [vmem:[%s1183 + $0x10] sm:$0xf]
        %v1189 = vld [vmem:[%s1183 + $0x14] sm:$0xf]
        %v1190 = vld [vmem:[%s1183 + $0x18] sm:$0xf]
        %v1191 = vld [vmem:[%s1183 + $0x1c] sm:$0xf]
        %v1192 = vld [vmem:[%s1183 + $0x20] sm:$0xf]
        %v1193 = vld [vmem:[%s1183 + $0x24] sm:$0xf]
        %v1194 = vld [vmem:[%s1183 + $0x28] sm:$0xf]
        %v1195 = vld [vmem:[%s1183 + $0x2c] sm:$0xf]
        %v1196 = vld [vmem:[%s1183 + $0x30] sm:$0xf]
        %v1197 = vld [vmem:[%s1183 + $0x34] sm:$0xf]
        %v1198 = vld [vmem:[%s1183 + $0x38] sm:$0xf]
        %v1199 = vld [vmem:[%s1183 + $0x3c] sm:$0xf]
        %v1200 = vld [vmem:[%s1183 + $0x40] sm:$0xf]
        %v1201 = vld [vmem:[%s1183 + $0x44] sm:$0xf]
        %v1202 = vld [vmem:[%s1183 + $0x48] sm:$0xf]
        %v1203 = vld [vmem:[%s1183 + $0x4c] sm:$0xf]
        %v1206 = vunpack.c.l.b16 %v1181
        %v1207 = vunpack.c.h.b16 %v1181
        %v1208 = vunpack.c.l.b16 %v1182
        %v1209 = vunpack.c.h.b16 %v1182
        %v1210 = vpack.c.b16 %v1208, %v1206
        %v1211 = vpack.c.b16 %v1209, %v1207
        %v1213 = vshrl.u32 %v1210, 16
        %v1215 = vshll.u32 %v1210, 16
        %v1217 = vrot.slane %v1215, 1
        %v1218 = vor.u32 %v1213, %v1217
        %v1220 = vshrl.u32 %v1211, 16
        %v1222 = vshll.u32 %v1211, 16
        %v1224 = vrot.slane %v1222, 1
        %v1225 = vor.u32 %v1220, %v1224
        %v1247 = vunpack.c.l.b16 %v1184
        %v1248 = vunpack.c.l.b16 %v1185
        %v1249 = vunpack.c.l.b16 %v1186
        %v1250 = vunpack.c.l.b16 %v1187
        %v1251 = vunpack.c.l.b16 %v1188
        %v1252 = vunpack.c.l.b16 %v1189
        %v1253 = vunpack.c.l.b16 %v1190
        %v1254 = vunpack.c.l.b16 %v1191
        %v1255 = vunpack.c.l.b16 %v1192
        %v1256 = vunpack.c.l.b16 %v1193
        %v1257 = vunpack.c.l.b16 %v1194
        %v1258 = vunpack.c.l.b16 %v1195
        %v1259 = vunpack.c.l.b16 %v1196
        %v1260 = vunpack.c.l.b16 %v1197
        %v1261 = vunpack.c.l.b16 %v1198
        %v1262 = vunpack.c.l.b16 %v1199
        %v1263 = vunpack.c.l.b16 %v1200
        %v1264 = vunpack.c.l.b16 %v1201
        %v1265 = vunpack.c.l.b16 %v1202
        %v1266 = vunpack.c.l.b16 %v1203
        %v1267 = vpack.c.b16 %v1248, %v1247
        %v1268 = vpack.c.b16 %v1250, %v1249
        %v1269 = vpack.c.b16 %v1252, %v1251
        %v1270 = vpack.c.b16 %v1254, %v1253
        %v1271 = vpack.c.b16 %v1256, %v1255
        %v1272 = vpack.c.b16 %v1258, %v1257
        %v1273 = vpack.c.b16 %v1260, %v1259
        %v1274 = vpack.c.b16 %v1262, %v1261
        %v1275 = vpack.c.b16 %v1264, %v1263
        %v1276 = vpack.c.b16 %v1266, %v1265
        %v1288 = vsel %vm274, %v1225, 0
        %1290 = vmatprep.subr.bf16.mxu0 0
        %1291 = vmatpush1.bf16.msra.mxu0 %v1267
        %1292 = vmatprep.subr.bf16.mxu0 0
        %1293 = vmatpush1.bf16.msra.mxu0 %v1268
        %1294 = vmatprep.subr.bf16.mxu0 0
        %1295 = vmatpush1.bf16.msra.mxu0 %v1269
        %1296 = vmatprep.subr.bf16.mxu0 0
        %1297 = vmatpush1.bf16.msra.mxu0 %v1270
        %1298 = vmatprep.subr.bf16.mxu0 0
        %1299 = vmatpush1.bf16.msra.mxu0 %v1271
        %1300 = vmatprep.subr.bf16.mxu0 0
        %1301 = vmatpush1.bf16.msra.mxu0 %v1272
        %1302 = vmatprep.subr.bf16.mxu0 0
        %1303 = vmatpush1.bf16.msra.mxu0 %v1273
        %1304 = vmatprep.subr.bf16.mxu0 0
        %1305 = vmatpush1.bf16.msra.mxu0 %v1274
        %1306 = vmatprep.subr.bf16.mxu0 0
        %1307 = vmatpush1.bf16.msra.mxu0 %v1275
        %1308 = vmatprep.subr.bf16.mxu0 0
        %1309 = vmatpush1.bf16.msra.mxu0 %v1276
        %1310 = vmatprep.subr.bf16.mxu0 0
        %1311 = vmatpush1.bf16.msra.mxu0 0
        %1312 = vmatprep.subr.bf16.mxu0 0
        %1313 = vmatpush1.bf16.msra.mxu0 0
        %1314 = vmatprep.subr.bf16.mxu0 0
        %1315 = vmatpush1.bf16.msra.mxu0 0
        %1316 = vmatprep.subr.bf16.mxu0 0
        %1317 = vmatpush1.bf16.msra.mxu0 0
        %1318 = vmatprep.subr.bf16.mxu0 0
        %1319 = vmatpush1.bf16.msra.mxu0 0
        %1320 = vmatprep.subr.bf16.mxu0 0
        %1321 = vmatpush1.bf16.msra.mxu0 0
        %1322 = vmatprep.mubr.bf16.mxu0 %v1288
        %1323 = vmatmul.mubr.bf16.gmra.mrb[0].mxu0 %v1218
        %v1324 = vpop.f32.mrb[0].mxu0
        %v1325 = vadd.f32 0.0, %v1324
        %v1326 = vpop.f32.mrb[0].mxu0
        %v1327 = vpop.f32.mrb[0].mxu0
        %v1328 = vpop.f32.mrb[0].mxu0
        %1329 = vdwg.mxu0
        %v1330 = vadd.f32 %v1180, %v1325
        %1331 = vst [vmem:[#allocation2] sm:$0xff] %v1330
        %v1332 = vld [vmem:[#allocation2] sm:$0xff]
        %v1333 = vld [vmem:[%s183 + $0x8] sm:$0xee]
        %v1334 = vld [vmem:[%s183 + $0x10] sm:$0x11]
        %s1335 = scalar_lea.vmem [#allocation3], 640
        %v1336 = vld [vmem:[%s1335] sm:$0xf]
        %v1337 = vld [vmem:[%s1335 + $0x4] sm:$0xf]
        %v1338 = vld [vmem:[%s1335 + $0x8] sm:$0xf]
        %v1339 = vld [vmem:[%s1335 + $0xc] sm:$0xf]
        %v1340 = vld [vmem:[%s1335 + $0x10] sm:$0xf]
        %v1341 = vld [vmem:[%s1335 + $0x14] sm:$0xf]
        %v1342 = vld [vmem:[%s1335 + $0x18] sm:$0xf]
        %v1343 = vld [vmem:[%s1335 + $0x1c] sm:$0xf]
        %v1344 = vld [vmem:[%s1335 + $0x20] sm:$0xf]
        %v1345 = vld [vmem:[%s1335 + $0x24] sm:$0xf]
        %v1346 = vld [vmem:[%s1335 + $0x28] sm:$0xf]
        %v1347 = vld [vmem:[%s1335 + $0x2c] sm:$0xf]
        %v1348 = vld [vmem:[%s1335 + $0x30] sm:$0xf]
        %v1349 = vld [vmem:[%s1335 + $0x34] sm:$0xf]
        %v1350 = vld [vmem:[%s1335 + $0x38] sm:$0xf]
        %v1351 = vld [vmem:[%s1335 + $0x3c] sm:$0xf]
        %v1352 = vld [vmem:[%s1335 + $0x40] sm:$0xf]
        %v1353 = vld [vmem:[%s1335 + $0x44] sm:$0xf]
        %v1354 = vld [vmem:[%s1335 + $0x48] sm:$0xf]
        %v1355 = vld [vmem:[%s1335 + $0x4c] sm:$0xf]
        %v1358 = vunpack.c.l.b16 %v1333
        %v1359 = vunpack.c.h.b16 %v1333
        %v1360 = vunpack.c.l.b16 %v1334
        %v1361 = vunpack.c.h.b16 %v1334
        %v1362 = vpack.c.b16 %v1360, %v1358
        %v1363 = vpack.c.b16 %v1361, %v1359
        %v1364 = vrot.slane %v1362, 1
        %v1365 = vrot.slane %v1363, 1
        %v1387 = vunpack.c.l.b16 %v1336
        %v1388 = vunpack.c.l.b16 %v1337
        %v1389 = vunpack.c.l.b16 %v1338
        %v1390 = vunpack.c.l.b16 %v1339
        %v1391 = vunpack.c.l.b16 %v1340
        %v1392 = vunpack.c.l.b16 %v1341
        %v1393 = vunpack.c.l.b16 %v1342
        %v1394 = vunpack.c.l.b16 %v1343
        %v1395 = vunpack.c.l.b16 %v1344
        %v1396 = vunpack.c.l.b16 %v1345
        %v1397 = vunpack.c.l.b16 %v1346
        %v1398 = vunpack.c.l.b16 %v1347
        %v1399 = vunpack.c.l.b16 %v1348
        %v1400 = vunpack.c.l.b16 %v1349
        %v1401 = vunpack.c.l.b16 %v1350
        %v1402 = vunpack.c.l.b16 %v1351
        %v1403 = vunpack.c.l.b16 %v1352
        %v1404 = vunpack.c.l.b16 %v1353
        %v1405 = vunpack.c.l.b16 %v1354
        %v1406 = vunpack.c.l.b16 %v1355
        %v1407 = vpack.c.b16 %v1388, %v1387
        %v1408 = vpack.c.b16 %v1390, %v1389
        %v1409 = vpack.c.b16 %v1392, %v1391
        %v1410 = vpack.c.b16 %v1394, %v1393
        %v1411 = vpack.c.b16 %v1396, %v1395
        %v1412 = vpack.c.b16 %v1398, %v1397
        %v1413 = vpack.c.b16 %v1400, %v1399
        %v1414 = vpack.c.b16 %v1402, %v1401
        %v1415 = vpack.c.b16 %v1404, %v1403
        %v1416 = vpack.c.b16 %v1406, %v1405
        %v1428 = vsel %vm274, %v1365, 0
        %1430 = vmatprep.subr.bf16.mxu0 0
        %1431 = vmatpush1.bf16.msra.mxu0 %v1407
        %1432 = vmatprep.subr.bf16.mxu0 0
        %1433 = vmatpush1.bf16.msra.mxu0 %v1408
        %1434 = vmatprep.subr.bf16.mxu0 0
        %1435 = vmatpush1.bf16.msra.mxu0 %v1409
        %1436 = vmatprep.subr.bf16.mxu0 0
        %1437 = vmatpush1.bf16.msra.mxu0 %v1410
        %1438 = vmatprep.subr.bf16.mxu0 0
        %1439 = vmatpush1.bf16.msra.mxu0 %v1411
        %1440 = vmatprep.subr.bf16.mxu0 0
        %1441 = vmatpush1.bf16.msra.mxu0 %v1412
        %1442 = vmatprep.subr.bf16.mxu0 0
        %1443 = vmatpush1.bf16.msra.mxu0 %v1413
        %1444 = vmatprep.subr.bf16.mxu0 0
        %1445 = vmatpush1.bf16.msra.mxu0 %v1414
        %1446 = vmatprep.subr.bf16.mxu0 0
        %1447 = vmatpush1.bf16.msra.mxu0 %v1415
        %1448 = vmatprep.subr.bf16.mxu0 0
        %1449 = vmatpush1.bf16.msra.mxu0 %v1416
        %1450 = vmatprep.subr.bf16.mxu0 0
        %1451 = vmatpush1.bf16.msra.mxu0 0
        %1452 = vmatprep.subr.bf16.mxu0 0
        %1453 = vmatpush1.bf16.msra.mxu0 0
        %1454 = vmatprep.subr.bf16.mxu0 0
        %1455 = vmatpush1.bf16.msra.mxu0 0
        %1456 = vmatprep.subr.bf16.mxu0 0
        %1457 = vmatpush1.bf16.msra.mxu0 0
        %1458 = vmatprep.subr.bf16.mxu0 0
        %1459 = vmatpush1.bf16.msra.mxu0 0
        %1460 = vmatprep.subr.bf16.mxu0 0
        %1461 = vmatpush1.bf16.msra.mxu0 0
        %1462 = vmatprep.mubr.bf16.mxu0 %v1428
        %1463 = vmatmul.mubr.bf16.gmra.mrb[0].mxu0 %v1364
        %v1464 = vpop.f32.mrb[0].mxu0
        %v1465 = vadd.f32 0.0, %v1464
        %v1466 = vpop.f32.mrb[0].mxu0
        %v1467 = vpop.f32.mrb[0].mxu0
        %v1468 = vpop.f32.mrb[0].mxu0
        %1469 = vdwg.mxu0
        %v1470 = vadd.f32 %v1332, %v1465
        %1471 = vst [vmem:[#allocation2] sm:$0xff] %v1470
        %v1472 = vld [vmem:[#allocation2] sm:$0xff]
        %v1473 = vld [vmem:[%s2] sm:$0x1]
        %v1475 = vlaneseq
        %v1476 = vshrl.u32 %v1475, 7
        %v1477 = vsub.s32 0, %v1476
        %v1478 = vrot.slane %v1473, %v1477
        %v1480 = vadd.f32 %v1472, %v1478
        %v1481 = vmax.f32 %v1480, 0.0
        %v1482 = vpack.c.bf16 %v1481, %v1481
        %1483 = vst [vmem:[%s178] sm:$0xf] %v1482
        %s1484 = sand.u32 %s94, 1
        %s1485 = scalar_lea.sflag [#allocation5], %s1484
        %s1486 = sand.u32 %s94, 1
        %s1487 = smul.addr %s1486, 4
        %s1488 = scalar_lea.vmem [#allocation6], %s1487
        // Predicated region
        $region37: #{tpu_custom_call.1} parent=31 // pred_check
          %p1489 = pneg %p104
        $region38: #{tpu_custom_call.1} parent=31 // pred_check_branch
          %1491 = sbr.rel (%p1489) target = $region40
        $region39: #{tpu_custom_call.1} parent=31 // pred_region
          %s1493 = ssub.s32 64, 64
          %1494 = vsyncadd %s1485, %s1493
          %s1495 = smul.addr %s18, 64
          %s1496 = scalar_lea.hbm %s3, %s1495
          %s1498 = sshll.u32 %s1488, 4
          %s1499 = int_to_ptr.vmem [resolvable:$true] %s1498
          %1501 = dma.vmem_to_hbm [thread:$0]  %s1499, 64, %s1496, %s1485
        $region40: #{tpu_custom_call.1} parent=31 // pred_fallthru
          _
      $region32: #{tpu_custom_call.1} parent=5 // pred_fallthru
        _
      %p1502 = scmp.le.s32.totalorder 2, %s13
      // Predicated region
      $region41: #{tpu_custom_call.1} parent=5 // pred_check
        %p1503 = pneg %p1502
      $region42: #{tpu_custom_call.1} parent=5 // pred_check_branch
        %1505 = sbr.rel (%p1503) target = $region44
      $region43: #{tpu_custom_call.1} parent=5 // pred_region
        %s1506 = ssub.s32 %s13, 2
        // Predicated region
        $region45: #{tpu_custom_call.1} parent=43 // pred_check
          %p1507 = pneg %p110
        $region46: #{tpu_custom_call.1} parent=43 // pred_check_branch
          %1509 = sbr.rel (%p1507) target = $region48
        $region47: #{tpu_custom_call.1} parent=43 // pred_region
          %s1510 = sand.u32 %s95, 1
          %s1511 = scalar_lea.sflag [#allocation5], %s1510
          %s1512 = sand.u32 %s95, 1
          %s1513 = smul.addr %s1512, 4
          %s1514 = scalar_lea.vmem [#allocation6], %s1513
          %1515 = dma.done %s1511, 64
        $region48: #{tpu_custom_call.1} parent=43 // pred_fallthru
          _
      $region44: #{tpu_custom_call.1} parent=5 // pred_fallthru
        _
    $region6: #{tpu_custom_call.1} parent=1 // loop_footer
      %s17 = sadd.s32 1, %s13
    $region7: #{tpu_custom_call.1} parent=1 // loop_footer_branch
      %12 = sbr.rel target = $region3
    $region8: #{tpu_custom_call.1} parent=1 // loop_exit
      _
    %1516 = vsyncpa [#allocation4], 1
    %s1517 = scalar_lea.sflag [#allocation4], 1
    %1518 = vsyncpa %s1517, 1
    %1519 = vsyncpa [#allocation5], 1
    %s1520 = scalar_lea.sflag [#allocation5], 1
    %1521 = vsyncpa %s1520, 1

</llo_original>
